<compile_context>
chip_gen: v7x
topology: tpu7x:2x2x1
jax: 0.10.0
libtpu: 0.0.40
codegen_flags: <defaults>
</compile_context>

<pallas_src>
import jax
import jax.numpy as jnp
from jax import lax
from jax.experimental import pallas as pl
from jax.experimental.pallas import tpu as pltpu

# defaults of the free loss function (forward() does not override them)
K_SOFT = 0.05
Q1 = 1.0
Q2 = 1.0


def _pcl_tiled_kernel(x_ref, y_ref, o_ref):
    """One (i, j) tile of the N x N pairwise-distance reduction.

    x_ref: (TM, D) row tile, y_ref: (TN, D) column tile (native dtype).
    o_ref: (2,) f32 in SMEM, resident across the whole grid:
      o_ref[0] = sum_i ||x_i - y_i||                  (positive pairs)
      o_ref[1] = sum_{i != j} 1 / (d_ij + K_SOFT)     (negative pairs)
    """
    i = pl.program_id(0)
    j = pl.program_id(1)

    # Zero the accumulators on the very first grid step (accumulator pattern).
    @pl.when((i == 0) & (j == 0))
    def _():
        o_ref[0] = jnp.float32(0.0)
        o_ref[1] = jnp.float32(0.0)

    x = x_ref[...]                       # (TM, D) native dtype -> MXU operand
    y = y_ref[...]                       # (TN, D)
    xf = x.astype(jnp.float32)
    yf = y.astype(jnp.float32)

    # Squared norms in f32 on the VPU; y's norm is produced as a lane-oriented
    # row vector (no explicit transpose of a column vector).
    x2 = jnp.sum(xf * xf, axis=-1, keepdims=True)        # (TM, 1)
    y2 = jnp.sum(yf * yf, axis=-1)[None, :]              # (1, TN)

    # Cross term x @ y^T on the MXU in the input dtype, f32 accumulation.
    xy = lax.dot_general(x, y, (((1,), (1,)), ((), ())),
                         preferred_element_type=jnp.float32)   # (TM, TN)

    d2 = x2 + y2 - 2.0 * xy
    dist = jnp.sqrt(jnp.maximum(d2, 0.0))

    # Softened Coulomb repulsion over the whole tile (Q1*Q2 == 1 at the module
    # defaults).  Approx reciprocal runs on the otherwise-idle EUP slot.
    rep_sum = jnp.sum(pl.reciprocal(dist + K_SOFT, approx=True))

    @pl.when(i == j)
    def _():
        # Block-diagonal tile: positive pairs computed directly from the
        # row-aligned tiles (no [TM, TN] iota mask / where), and their
        # repulsion contribution is subtracted back out of rep_sum.
        diff = xf - yf
        d_pos = jnp.sqrt(jnp.sum(diff * diff, axis=-1, keepdims=True))  # (TM,1)
        o_ref[0] += jnp.sum(d_pos)
        o_ref[1] += rep_sum - jnp.sum(pl.reciprocal(d_pos + K_SOFT, approx=True))

    @pl.when(i != j)
    def _():
        o_ref[1] += rep_sum


def nce_loss(x, y, *, block=None):
    """Tiled Pallas contrastive loss over two [N, D] embedding sets."""
    assert x.shape == y.shape and x.ndim == 2
    n, dim = x.shape

    if block is None:
        # Largest row/column tile that divides N, capped at 512 so the tile
        # working set stays comfortable on v7x's 64 MiB VMEM (v6e/v5e have
        # 128 MiB and could take 1024+).
        block = next((b for b in (512, 256, 128, 64, 32, 16, 8) if n % b == 0), n)
    assert n % block == 0
    tm = tn = block
    gi, gj = n // tm, n // tn

    sums = pl.pallas_call(
        _pcl_tiled_kernel,
        out_shape=jax.ShapeDtypeStruct((2,), jnp.float32),
        grid_spec=pltpu.PrefetchScalarGridSpec(
            num_scalar_prefetch=0,
            grid=(gi, gj),
            in_specs=[
                pl.BlockSpec((tm, dim), lambda i, j: (i, 0)),   # x row tile
                pl.BlockSpec((tn, dim), lambda i, j: (j, 0)),   # y column tile
            ],
            # Scalar accumulators live in SMEM and stay resident for the whole
            # grid: no per-step writeback, no masked 1-lane VMEM stores.
            out_specs=pl.BlockSpec(memory_space=pltpu.MemorySpace.SMEM),
        ),
        compiler_params=pltpu.CompilerParams(
            # Both axes "arbitrary": the single SMEM accumulator is shared by
            # every grid step, so sharding the i axis across v7x's two cores
            # would race / leave one core's accumulator uninitialized.
            # (Marking i "parallel" would require per-i-tile partial outputs.)
            dimension_semantics=("arbitrary", "arbitrary"),
            vmem_limit_bytes=48 * 1024 * 1024,
        ),
    )(x, y)

    pos_sum, rep_sum = sums[0], sums[1]
    n_neg = n * (n - 1) if n > 1 else 1   # guard N == 1
    return pos_sum / jnp.float32(n) + rep_sum / jnp.float32(n_neg)


class NCELoss:
    """JAX/Pallas port of the PyTorch module.  `temperature` is stored but, as
    in the reference forward(), never used (forward just calls nce_loss(x, y))."""

    def __init__(self, temperature=0.5):
        self.temperature = 0.5

    def __call__(self, x, y):
        return nce_loss(x, y)


def _reference(x, y):
    """Pure-JAX reference (exact divide, iota mask) for the sanity check."""
    x = x.astype(jnp.float32)
    y = y.astype(jnp.float32)
    n = x.shape[0]
    d2 = (jnp.sum(x * x, -1)[:, None] + jnp.sum(y * y, -1)[None, :]
          - 2.0 * x @ y.T)
    dd = jnp.sqrt(jnp.maximum(d2, 0.0))
    eye = jnp.eye(n, dtype=bool)
    pos = jnp.sum(jnp.where(eye, dd, 0.0)) / n
    neg = jnp.sum(jnp.where(eye, 0.0, (Q1 * Q2) / (dd + K_SOFT))) / (n * (n - 1))
    return pos + neg


if __name__ == "__main__":
    key = jax.random.PRNGKey(0)
    kx, ky = jax.random.split(key)
    N, D = 256, 128                     # multiples of (8, 128) -> dense vregs
    x = jax.random.normal(kx, (N, D), dtype=jnp.float32)
    y = jax.random.normal(ky, (N, D), dtype=jnp.float32)

    # Module-style call (default tiling picks a single 256-row tile).
    loss_mod = NCELoss()
    loss = loss_mod(x, y)
    jax.block_until_ready(loss)

    # Multi-tile path: 2x2 grid exercises diagonal and off-diagonal blocks.
    loss_tiled = nce_loss(x, y, block=128)
    jax.block_until_ready(loss_tiled)

    ref = _reference(x, y)
    assert jnp.allclose(loss, ref, rtol=1e-2, atol=1e-2), (loss, ref)
    assert jnp.allclose(loss_tiled, ref, rtol=1e-2, atol=1e-2), (loss_tiled, ref)
    print("KERNEL_OK")
</pallas_src>

<mosaic_0001>
module attributes {stable_mosaic.version = 11 : i64} {
  func.func @_pcl_tiled_kernel(%arg0: i32, %arg1: i32, %arg2: memref<256x128xf32, #tpu.memory_space<vmem>>, %arg3: memref<256x128xf32, #tpu.memory_space<vmem>>, %arg4: memref<2xf32, #tpu.memory_space<smem>>) attributes {dimension_semantics = [#tpu.dimension_semantics<arbitrary>, #tpu.dimension_semantics<arbitrary>], iteration_bounds = array<i64: 1, 1>, scalar_prefetch = 0 : i64, scratch_operands = 0 : i64, tpu.core_type = #tpu.core_type<tc>, window_params = [{transform_indices = @transform_0, window_bounds = array<i64: 256, 128>}, {transform_indices = @transform_1, window_bounds = array<i64: 256, 128>}, {transform_indices = @transform_2, window_bounds = array<i64: 2>}]} {
    %c0_i32 = arith.constant 0 : i32
    %0 = arith.cmpi eq, %arg0, %c0_i32 : i32
    %c0_i32_0 = arith.constant 0 : i32
    %1 = arith.cmpi eq, %arg1, %c0_i32_0 : i32
    %2 = arith.andi %0, %1 : i1
    %3 = arith.extui %2 : i1 to i32
    %c0_i32_1 = arith.constant 0 : i32
    %4 = arith.cmpi ne, %3, %c0_i32_1 : i32
    scf.if %4 {
      %cst_13 = arith.constant 0.000000e+00 : f32
      %c0_14 = arith.constant 0 : index
      %36 = memref.load %arg4[%c0_14] : memref<2xf32, #tpu.memory_space<smem>>
      memref.store %cst_13, %arg4[%c0_14] : memref<2xf32, #tpu.memory_space<smem>>
      %cst_15 = arith.constant 0.000000e+00 : f32
      %c1 = arith.constant 1 : index
      %37 = memref.load %arg4[%c1] : memref<2xf32, #tpu.memory_space<smem>>
      memref.store %cst_15, %arg4[%c1] : memref<2xf32, #tpu.memory_space<smem>>
    } else {
    }
    %c0 = arith.constant 0 : index
    %c0_2 = arith.constant 0 : index
    %5 = vector.load %arg2[%c0, %c0_2] : memref<256x128xf32, #tpu.memory_space<vmem>>, vector<256x128xf32>
    %c0_3 = arith.constant 0 : index
    %c0_4 = arith.constant 0 : index
    %6 = vector.load %arg3[%c0_3, %c0_4] : memref<256x128xf32, #tpu.memory_space<vmem>>, vector<256x128xf32>
    %7 = arith.mulf %5, %5 : vector<256x128xf32>
    %cst = arith.constant dense<0.000000e+00> : vector<256xf32>
    %8 = vector.multi_reduction <add>, %7, %cst [1] : vector<256x128xf32> to vector<256xf32>
    %9 = vector.shape_cast %8 : vector<256xf32> to vector<256x1xf32>
    %10 = arith.mulf %6, %6 : vector<256x128xf32>
    %cst_5 = arith.constant dense<0.000000e+00> : vector<256xf32>
    %11 = vector.multi_reduction <add>, %10, %cst_5 [1] : vector<256x128xf32> to vector<256xf32>
    %12 = vector.shape_cast %11 : vector<256xf32> to vector<1x256xf32>
    %cst_6 = arith.constant dense<0.000000e+00> : vector<256x256xf32>
    %13 = tpu.matmul %5, %6, %cst_6 {dimension_numbers = #tpu.dot_dimension_numbers<[1], [1], [0], [0], [0, 0, 1, 0], [], []>} : vector<256x128xf32>, vector<256x128xf32>, vector<256x256xf32> -> vector<256x256xf32>
    %14 = vector.broadcast %9 : vector<256x1xf32> to vector<256x256xf32>
    %15 = vector.broadcast %12 : vector<1x256xf32> to vector<256x256xf32>
    %16 = arith.addf %14, %15 : vector<256x256xf32>
    %cst_7 = arith.constant 2.000000e+00 : f32
    %17 = vector.broadcast %cst_7 : f32 to vector<256x256xf32>
    %18 = arith.mulf %17, %13 : vector<256x256xf32>
    %19 = arith.subf %16, %18 : vector<256x256xf32>
    %cst_8 = arith.constant 0.000000e+00 : f32
    %20 = vector.broadcast %cst_8 : f32 to vector<256x256xf32>
    %21 = arith.maximumf %19, %20 : vector<256x256xf32>
    %22 = math.sqrt %21 : vector<256x256xf32>
    %cst_9 = arith.constant 5.000000e-02 : f32
    %23 = vector.broadcast %cst_9 : f32 to vector<256x256xf32>
    %24 = arith.addf %22, %23 : vector<256x256xf32>
    %25 = tpu.reciprocal %24 {approx = true} : vector<256x256xf32> -> vector<256x256xf32>
    %26 = vector.shape_cast %25 : vector<256x256xf32> to vector<1x256x256xf32>
    %cst_10 = arith.constant dense<0.000000e+00> : vector<1xf32>
    %27 = vector.multi_reduction <add>, %26, %cst_10 [1, 2] : vector<1x256x256xf32> to vector<1xf32>
    %28 = vector.shape_cast %27 : vector<1xf32> to vector<1x1x1xf32>
    %29 = vector.extract %28[0, 0, 0] : f32 from vector<1x1x1xf32>
    %30 = arith.cmpi eq, %arg0, %arg1 : i32
    %31 = arith.extui %30 : i1 to i32
    %c0_i32_11 = arith.constant 0 : i32
    %32 = arith.cmpi ne, %31, %c0_i32_11 : i32
    scf.if %32 {
      %36 = arith.subf %5, %6 : vector<256x128xf32>
      %37 = arith.mulf %36, %36 : vector<256x128xf32>
      %cst_13 = arith.constant dense<0.000000e+00> : vector<256xf32>
      %38 = vector.multi_reduction <add>, %37, %cst_13 [1] : vector<256x128xf32> to vector<256xf32>
      %39 = vector.shape_cast %38 : vector<256xf32> to vector<256x1xf32>
      %40 = math.sqrt %39 : vector<256x1xf32>
      %c0_14 = arith.constant 0 : index
      %41 = memref.load %arg4[%c0_14] : memref<2xf32, #tpu.memory_space<smem>>
      %42 = vector.shape_cast %40 : vector<256x1xf32> to vector<1x256x1xf32>
      %cst_15 = arith.constant dense<0.000000e+00> : vector<1xf32>
      %43 = vector.multi_reduction <add>, %42, %cst_15 [1, 2] : vector<1x256x1xf32> to vector<1xf32>
      %44 = vector.shape_cast %43 : vector<1xf32> to vector<1x1x1xf32>
      %45 = vector.extract %44[0, 0, 0] : f32 from vector<1x1x1xf32>
      %46 = arith.addf %41, %45 : f32
      %c0_16 = arith.constant 0 : index
      %47 = memref.load %arg4[%c0_16] : memref<2xf32, #tpu.memory_space<smem>>
      memref.store %46, %arg4[%c0_16] : memref<2xf32, #tpu.memory_space<smem>>
      %c1 = arith.constant 1 : index
      %48 = memref.load %arg4[%c1] : memref<2xf32, #tpu.memory_space<smem>>
      %cst_17 = arith.constant 5.000000e-02 : f32
      %49 = vector.broadcast %cst_17 : f32 to vector<256x1xf32>
      %50 = arith.addf %40, %49 : vector<256x1xf32>
      %51 = tpu.reciprocal %50 {approx = true} : vector<256x1xf32> -> vector<256x1xf32>
      %52 = vector.shape_cast %51 : vector<256x1xf32> to vector<1x256x1xf32>
      %cst_18 = arith.constant dense<0.000000e+00> : vector<1xf32>
      %53 = vector.multi_reduction <add>, %52, %cst_18 [1, 2] : vector<1x256x1xf32> to vector<1xf32>
      %54 = vector.shape_cast %53 : vector<1xf32> to vector<1x1x1xf32>
      %55 = vector.extract %54[0, 0, 0] : f32 from vector<1x1x1xf32>
      %56 = arith.subf %29, %55 : f32
      %57 = arith.addf %48, %56 : f32
      %c1_19 = arith.constant 1 : index
      %58 = memref.load %arg4[%c1_19] : memref<2xf32, #tpu.memory_space<smem>>
      memref.store %57, %arg4[%c1_19] : memref<2xf32, #tpu.memory_space<smem>>
    } else {
    }
    %33 = arith.cmpi ne, %arg0, %arg1 : i32
    %34 = arith.extui %33 : i1 to i32
    %c0_i32_12 = arith.constant 0 : i32
    %35 = arith.cmpi ne, %34, %c0_i32_12 : i32
    scf.if %35 {
      %c1 = arith.constant 1 : index
      %36 = memref.load %arg4[%c1] : memref<2xf32, #tpu.memory_space<smem>>
      %37 = arith.addf %36, %29 : f32
      %c1_13 = arith.constant 1 : index
      %38 = memref.load %arg4[%c1_13] : memref<2xf32, #tpu.memory_space<smem>>
      memref.store %37, %arg4[%c1_13] : memref<2xf32, #tpu.memory_space<smem>>
    } else {
    }
    return
  }
  func.func @transform_0(%arg0: i32, %arg1: i32) -> (i32, i32) {
    %c0_i32 = arith.constant 0 : i32
    %c0_i32_0 = arith.constant 0 : i32
    return %arg0, %c0_i32 : i32, i32
  }
  func.func @transform_1(%arg0: i32, %arg1: i32) -> (i32, i32) {
    %c0_i32 = arith.constant 0 : i32
    %c0_i32_0 = arith.constant 0 : i32
    return %arg1, %c0_i32 : i32, i32
  }
  func.func @transform_2(%arg0: i32, %arg1: i32) -> i32 {
    %c0_i32 = arith.constant 0 : i32
    %c0_i32_0 = arith.constant 0 : i32
    return %c0_i32 : i32
  }
}

</mosaic_0001>

<llo_original>
// kernel: tpu_custom_call.1
$region0: #{tpu_custom_call.1}
  #allocation0 [shape = 'u32[]', space=smem, size = 0x4, offset = 0x4, fixed_abs, tag = 'smem constant byte address 0x4 - core index']
  #allocation1 [shape = 'u32[144,128]{1,0:T(1,128)}', space=vmem, size = 0x12000, scoped, tag = 'internal scratch']
  %s0 = inlined_call_operand.hbm [shape: f32[256,128], index: 0, kind: input, shape index: {}]
  %s1 = inlined_call_operand.hbm [shape: f32[256,128], index: 1, kind: input, shape index: {}]
  %s2 = inlined_call_operand.hbm [shape: f32[2], index: 2, kind: output, shape index: {}]
  %s3 = sld [smem:[#allocation0]]
  $region38: #{tpu_custom_call.1} parent=0
    _
  %s5 = ssub.s32 1, %s3
  %s6 = scalar_select 0, %s5, %s3
  $region1: #{tpu_custom_call.1} parent=0
    #allocation2 [shape = 'u8[131072]{0}', space=vmem, size = 0x20000, scoped, tag = 'input window, operand 0, single buffered']
    #allocation3 [shape = 's32[1]{0}', space=sflag, size = 0x4, scoped, tag = 'scoped memory for tpu_custom_call.1']
    #allocation4 [shape = 's32[1]{0}', space=sflag, size = 0x4, scoped, tag = 'scoped memory for tpu_custom_call.1']
    #allocation5 [shape = 'u8[131072]{0}', space=vmem, size = 0x20000, scoped, tag = 'input window, operand 1, single buffered']
    #allocation6 [shape = 's32[1]{0}', space=sflag, size = 0x4, scoped, tag = 'scoped memory for tpu_custom_call.1']
    #allocation7 [shape = 'u8[512]{0}', space=smem, size = 0x200, scoped, tag = 'output window, operand 0, single buffered']
    %7 = vsyncpa [#allocation3], 0
    %8 = vsyncpa [#allocation6], 0
    %9 = vsyncpa [#allocation4], 0
    // Predicated region
    $region2: #{tpu_custom_call.1} parent=1 // pred_check
      _
    $region3: #{tpu_custom_call.1} parent=1 // pred_check_branch
      %11 = sbr.rel (0) target = $region5
    $region4: #{tpu_custom_call.1} parent=1 // pred_region
      %s13 = ssub.s32 4096, 4096
      %14 = vsyncadd [#allocation3], %s13
      %s15 = sshll.u32 [#allocation2], 4
      %s16 = int_to_ptr.vmem [resolvable:$true] %s15
      %21 = dma.hbm_to_vmem [thread:$0]  %s0, 4096, %s16, [#allocation3], 128, 128, 8
    $region5: #{tpu_custom_call.1} parent=1 // pred_fallthru
      _
    // Predicated region
    $region6: #{tpu_custom_call.1} parent=1 // pred_check
      _
    $region7: #{tpu_custom_call.1} parent=1 // pred_check_branch
      %23 = sbr.rel (0) target = $region9
    $region8: #{tpu_custom_call.1} parent=1 // pred_region
      %s25 = ssub.s32 4096, 4096
      %26 = vsyncadd [#allocation6], %s25
      %s27 = sshll.u32 [#allocation5], 4
      %s28 = int_to_ptr.vmem [resolvable:$true] %s27
      %33 = dma.hbm_to_vmem [thread:$0]  %s1, 4096, %s28, [#allocation6], 128, 128, 8
    $region9: #{tpu_custom_call.1} parent=1 // pred_fallthru
      _
    // Predicated region
    $region10: #{tpu_custom_call.1} parent=1 // pred_check
      _
    $region11: #{tpu_custom_call.1} parent=1 // pred_check_branch
      %35 = sbr.rel (0) target = $region13
    $region12: #{tpu_custom_call.1} parent=1 // pred_region
      %36 = dma.done [#allocation3], 4096
    $region13: #{tpu_custom_call.1} parent=1 // pred_fallthru
      _
    // Predicated region
    $region14: #{tpu_custom_call.1} parent=1 // pred_check
      _
    $region15: #{tpu_custom_call.1} parent=1 // pred_check_branch
      %38 = sbr.rel (0) target = $region17
    $region16: #{tpu_custom_call.1} parent=1 // pred_region
      %39 = dma.done [#allocation6], 4096
    $region17: #{tpu_custom_call.1} parent=1 // pred_fallthru
      _
    %p40 = scmp.eq.s32.totalorder 0, 0
    %p41 = scmp.eq.s32.totalorder 0, 0
    %p42 = pnand %p40, %p41
    %p43 = pneg %p42
    // Predicated region
    $region18: #{tpu_custom_call.1} parent=1 // pred_check
      _
    $region19: #{tpu_custom_call.1} parent=1 // pred_check_branch
      %45 = sbr.rel (%p42) target = $region21
    $region20: #{tpu_custom_call.1} parent=1 // pred_region
      %s46 = scalar_lea.smem [#allocation7], 0
      %47 = sst [smem:[%s46]] 0.0
      %s48 = scalar_lea.smem [#allocation7], 1
      %49 = sst [smem:[%s48]] 0.0
    $region21: #{tpu_custom_call.1} parent=1 // pred_fallthru
      _
    %v50 = vld [vmem:[#allocation2] sm:$0xff]
    %v51 = vld [vmem:[#allocation2 + $0x8] sm:$0xff]
    %v52 = vld [vmem:[#allocation2 + $0x10] sm:$0xff]
    %v53 = vld [vmem:[#allocation2 + $0x18] sm:$0xff]
    %v54 = vld [vmem:[#allocation2 + $0x20] sm:$0xff]
    %v55 = vld [vmem:[#allocation2 + $0x28] sm:$0xff]
    %v56 = vld [vmem:[#allocation2 + $0x30] sm:$0xff]
    %v57 = vld [vmem:[#allocation2 + $0x38] sm:$0xff]
    %v58 = vld [vmem:[#allocation2 + $0x40] sm:$0xff]
    %v59 = vld [vmem:[#allocation2 + $0x48] sm:$0xff]
    %v60 = vld [vmem:[#allocation2 + $0x50] sm:$0xff]
    %v61 = vld [vmem:[#allocation2 + $0x58] sm:$0xff]
    %v62 = vld [vmem:[#allocation2 + $0x60] sm:$0xff]
    %v63 = vld [vmem:[#allocation2 + $0x68] sm:$0xff]
    %v64 = vld [vmem:[#allocation2 + $0x70] sm:$0xff]
    %v65 = vld [vmem:[#allocation2 + $0x78] sm:$0xff]
    %v66 = vld [vmem:[#allocation2 + $0x80] sm:$0xff]
    %v67 = vld [vmem:[#allocation2 + $0x88] sm:$0xff]
    %v68 = vld [vmem:[#allocation2 + $0x90] sm:$0xff]
    %v69 = vld [vmem:[#allocation2 + $0x98] sm:$0xff]
    %v70 = vld [vmem:[#allocation2 + $0xa0] sm:$0xff]
    %v71 = vld [vmem:[#allocation2 + $0xa8] sm:$0xff]
    %v72 = vld [vmem:[#allocation2 + $0xb0] sm:$0xff]
    %v73 = vld [vmem:[#allocation2 + $0xb8] sm:$0xff]
    %v74 = vld [vmem:[#allocation2 + $0xc0] sm:$0xff]
    %v75 = vld [vmem:[#allocation2 + $0xc8] sm:$0xff]
    %v76 = vld [vmem:[#allocation2 + $0xd0] sm:$0xff]
    %v77 = vld [vmem:[#allocation2 + $0xd8] sm:$0xff]
    %v78 = vld [vmem:[#allocation2 + $0xe0] sm:$0xff]
    %v79 = vld [vmem:[#allocation2 + $0xe8] sm:$0xff]
    %v80 = vld [vmem:[#allocation2 + $0xf0] sm:$0xff]
    %v81 = vld [vmem:[#allocation2 + $0xf8] sm:$0xff]
    %v82 = vld [vmem:[#allocation5] sm:$0xff]
    %v83 = vld [vmem:[#allocation5 + $0x8] sm:$0xff]
    %v84 = vld [vmem:[#allocation5 + $0x10] sm:$0xff]
    %v85 = vld [vmem:[#allocation5 + $0x18] sm:$0xff]
    %v86 = vld [vmem:[#allocation5 + $0x20] sm:$0xff]
    %v87 = vld [vmem:[#allocation5 + $0x28] sm:$0xff]
    %v88 = vld [vmem:[#allocation5 + $0x30] sm:$0xff]
    %v89 = vld [vmem:[#allocation5 + $0x38] sm:$0xff]
    %v90 = vld [vmem:[#allocation5 + $0x40] sm:$0xff]
    %v91 = vld [vmem:[#allocation5 + $0x48] sm:$0xff]
    %v92 = vld [vmem:[#allocation5 + $0x50] sm:$0xff]
    %v93 = vld [vmem:[#allocation5 + $0x58] sm:$0xff]
    %v94 = vld [vmem:[#allocation5 + $0x60] sm:$0xff]
    %v95 = vld [vmem:[#allocation5 + $0x68] sm:$0xff]
    %v96 = vld [vmem:[#allocation5 + $0x70] sm:$0xff]
    %v97 = vld [vmem:[#allocation5 + $0x78] sm:$0xff]
    %v98 = vld [vmem:[#allocation5 + $0x80] sm:$0xff]
    %v99 = vld [vmem:[#allocation5 + $0x88] sm:$0xff]
    %v100 = vld [vmem:[#allocation5 + $0x90] sm:$0xff]
    %v101 = vld [vmem:[#allocation5 + $0x98] sm:$0xff]
    %v102 = vld [vmem:[#allocation5 + $0xa0] sm:$0xff]
    %v103 = vld [vmem:[#allocation5 + $0xa8] sm:$0xff]
    %v104 = vld [vmem:[#allocation5 + $0xb0] sm:$0xff]
    %v105 = vld [vmem:[#allocation5 + $0xb8] sm:$0xff]
    %v106 = vld [vmem:[#allocation5 + $0xc0] sm:$0xff]
    %v107 = vld [vmem:[#allocation5 + $0xc8] sm:$0xff]
    %v108 = vld [vmem:[#allocation5 + $0xd0] sm:$0xff]
    %v109 = vld [vmem:[#allocation5 + $0xd8] sm:$0xff]
    %v110 = vld [vmem:[#allocation5 + $0xe0] sm:$0xff]
    %v111 = vld [vmem:[#allocation5 + $0xe8] sm:$0xff]
    %v112 = vld [vmem:[#allocation5 + $0xf0] sm:$0xff]
    %v113 = vld [vmem:[#allocation5 + $0xf8] sm:$0xff]
    %v114 = vmul.f32 %v50, %v50
    %v115 = vmul.f32 %v51, %v51
    %v116 = vmul.f32 %v52, %v52
    %v117 = vmul.f32 %v53, %v53
    %v118 = vmul.f32 %v54, %v54
    %v119 = vmul.f32 %v55, %v55
    %v120 = vmul.f32 %v56, %v56
    %v121 = vmul.f32 %v57, %v57
    %v122 = vmul.f32 %v58, %v58
    %v123 = vmul.f32 %v59, %v59
    %v124 = vmul.f32 %v60, %v60
    %v125 = vmul.f32 %v61, %v61
    %v126 = vmul.f32 %v62, %v62
    %v127 = vmul.f32 %v63, %v63
    %v128 = vmul.f32 %v64, %v64
    %v129 = vmul.f32 %v65, %v65
    %v130 = vmul.f32 %v66, %v66
    %v131 = vmul.f32 %v67, %v67
    %v132 = vmul.f32 %v68, %v68
    %v133 = vmul.f32 %v69, %v69
    %v134 = vmul.f32 %v70, %v70
    %v135 = vmul.f32 %v71, %v71
    %v136 = vmul.f32 %v72, %v72
    %v137 = vmul.f32 %v73, %v73
    %v138 = vmul.f32 %v74, %v74
    %v139 = vmul.f32 %v75, %v75
    %v140 = vmul.f32 %v76, %v76
    %v141 = vmul.f32 %v77, %v77
    %v142 = vmul.f32 %v78, %v78
    %v143 = vmul.f32 %v79, %v79
    %v144 = vmul.f32 %v80, %v80
    %v145 = vmul.f32 %v81, %v81
    %146 = vadd.xlane.f32.xlu0 %v114
    %v147 = vpop.xlane.xlu0 %146
    %148 = vadd.xlane.f32.xlu0 %v115
    %v149 = vpop.xlane.xlu0 %148
    %150 = vadd.xlane.f32.xlu0 %v116
    %v151 = vpop.xlane.xlu0 %150
    %152 = vadd.xlane.f32.xlu0 %v117
    %v153 = vpop.xlane.xlu0 %152
    %154 = vadd.xlane.f32.xlu0 %v118
    %v155 = vpop.xlane.xlu0 %154
    %156 = vadd.xlane.f32.xlu0 %v119
    %v157 = vpop.xlane.xlu0 %156
    %158 = vadd.xlane.f32.xlu0 %v120
    %v159 = vpop.xlane.xlu0 %158
    %160 = vadd.xlane.f32.xlu0 %v121
    %v161 = vpop.xlane.xlu0 %160
    %162 = vadd.xlane.f32.xlu0 %v122
    %v163 = vpop.xlane.xlu0 %162
    %164 = vadd.xlane.f32.xlu0 %v123
    %v165 = vpop.xlane.xlu0 %164
    %166 = vadd.xlane.f32.xlu0 %v124
    %v167 = vpop.xlane.xlu0 %166
    %168 = vadd.xlane.f32.xlu0 %v125
    %v169 = vpop.xlane.xlu0 %168
    %170 = vadd.xlane.f32.xlu0 %v126
    %v171 = vpop.xlane.xlu0 %170
    %172 = vadd.xlane.f32.xlu0 %v127
    %v173 = vpop.xlane.xlu0 %172
    %174 = vadd.xlane.f32.xlu0 %v128
    %v175 = vpop.xlane.xlu0 %174
    %176 = vadd.xlane.f32.xlu0 %v129
    %v177 = vpop.xlane.xlu0 %176
    %178 = vadd.xlane.f32.xlu0 %v130
    %v179 = vpop.xlane.xlu0 %178
    %180 = vadd.xlane.f32.xlu0 %v131
    %v181 = vpop.xlane.xlu0 %180
    %182 = vadd.xlane.f32.xlu0 %v132
    %v183 = vpop.xlane.xlu0 %182
    %184 = vadd.xlane.f32.xlu0 %v133
    %v185 = vpop.xlane.xlu0 %184
    %186 = vadd.xlane.f32.xlu0 %v134
    %v187 = vpop.xlane.xlu0 %186
    %188 = vadd.xlane.f32.xlu0 %v135
    %v189 = vpop.xlane.xlu0 %188
    %190 = vadd.xlane.f32.xlu0 %v136
    %v191 = vpop.xlane.xlu0 %190
    %192 = vadd.xlane.f32.xlu0 %v137
    %v193 = vpop.xlane.xlu0 %192
    %194 = vadd.xlane.f32.xlu0 %v138
    %v195 = vpop.xlane.xlu0 %194
    %196 = vadd.xlane.f32.xlu0 %v139
    %v197 = vpop.xlane.xlu0 %196
    %198 = vadd.xlane.f32.xlu0 %v140
    %v199 = vpop.xlane.xlu0 %198
    %200 = vadd.xlane.f32.xlu0 %v141
    %v201 = vpop.xlane.xlu0 %200
    %202 = vadd.xlane.f32.xlu0 %v142
    %v203 = vpop.xlane.xlu0 %202
    %204 = vadd.xlane.f32.xlu0 %v143
    %v205 = vpop.xlane.xlu0 %204
    %206 = vadd.xlane.f32.xlu0 %v144
    %v207 = vpop.xlane.xlu0 %206
    %208 = vadd.xlane.f32.xlu0 %v145
    %v209 = vpop.xlane.xlu0 %208
    %v210 = vmul.f32 %v82, %v82
    %v211 = vmul.f32 %v83, %v83
    %v212 = vmul.f32 %v84, %v84
    %v213 = vmul.f32 %v85, %v85
    %v214 = vmul.f32 %v86, %v86
    %v215 = vmul.f32 %v87, %v87
    %v216 = vmul.f32 %v88, %v88
    %v217 = vmul.f32 %v89, %v89
    %v218 = vmul.f32 %v90, %v90
    %v219 = vmul.f32 %v91, %v91
    %v220 = vmul.f32 %v92, %v92
    %v221 = vmul.f32 %v93, %v93
    %v222 = vmul.f32 %v94, %v94
    %v223 = vmul.f32 %v95, %v95
    %v224 = vmul.f32 %v96, %v96
    %v225 = vmul.f32 %v97, %v97
    %v226 = vmul.f32 %v98, %v98
    %v227 = vmul.f32 %v99, %v99
    %v228 = vmul.f32 %v100, %v100
    %v229 = vmul.f32 %v101, %v101
    %v230 = vmul.f32 %v102, %v102
    %v231 = vmul.f32 %v103, %v103
    %v232 = vmul.f32 %v104, %v104
    %v233 = vmul.f32 %v105, %v105
    %v234 = vmul.f32 %v106, %v106
    %v235 = vmul.f32 %v107, %v107
    %v236 = vmul.f32 %v108, %v108
    %v237 = vmul.f32 %v109, %v109
    %v238 = vmul.f32 %v110, %v110
    %v239 = vmul.f32 %v111, %v111
    %v240 = vmul.f32 %v112, %v112
    %v241 = vmul.f32 %v113, %v113
    %242 = vadd.xlane.f32.xlu0 %v210
    %v243 = vpop.xlane.xlu0 %242
    %244 = vadd.xlane.f32.xlu0 %v211
    %v245 = vpop.xlane.xlu0 %244
    %246 = vadd.xlane.f32.xlu0 %v212
    %v247 = vpop.xlane.xlu0 %246
    %248 = vadd.xlane.f32.xlu0 %v213
    %v249 = vpop.xlane.xlu0 %248
    %250 = vadd.xlane.f32.xlu0 %v214
    %v251 = vpop.xlane.xlu0 %250
    %252 = vadd.xlane.f32.xlu0 %v215
    %v253 = vpop.xlane.xlu0 %252
    %254 = vadd.xlane.f32.xlu0 %v216
    %v255 = vpop.xlane.xlu0 %254
    %256 = vadd.xlane.f32.xlu0 %v217
    %v257 = vpop.xlane.xlu0 %256
    %258 = vadd.xlane.f32.xlu0 %v218
    %v259 = vpop.xlane.xlu0 %258
    %260 = vadd.xlane.f32.xlu0 %v219
    %v261 = vpop.xlane.xlu0 %260
    %262 = vadd.xlane.f32.xlu0 %v220
    %v263 = vpop.xlane.xlu0 %262
    %264 = vadd.xlane.f32.xlu0 %v221
    %v265 = vpop.xlane.xlu0 %264
    %266 = vadd.xlane.f32.xlu0 %v222
    %v267 = vpop.xlane.xlu0 %266
    %268 = vadd.xlane.f32.xlu0 %v223
    %v269 = vpop.xlane.xlu0 %268
    %270 = vadd.xlane.f32.xlu0 %v224
    %v271 = vpop.xlane.xlu0 %270
    %272 = vadd.xlane.f32.xlu0 %v225
    %v273 = vpop.xlane.xlu0 %272
    %274 = vadd.xlane.f32.xlu0 %v226
    %v275 = vpop.xlane.xlu0 %274
    %276 = vadd.xlane.f32.xlu0 %v227
    %v277 = vpop.xlane.xlu0 %276
    %278 = vadd.xlane.f32.xlu0 %v228
    %v279 = vpop.xlane.xlu0 %278
    %280 = vadd.xlane.f32.xlu0 %v229
    %v281 = vpop.xlane.xlu0 %280
    %282 = vadd.xlane.f32.xlu0 %v230
    %v283 = vpop.xlane.xlu0 %282
    %284 = vadd.xlane.f32.xlu0 %v231
    %v285 = vpop.xlane.xlu0 %284
    %286 = vadd.xlane.f32.xlu0 %v232
    %v287 = vpop.xlane.xlu0 %286
    %288 = vadd.xlane.f32.xlu0 %v233
    %v289 = vpop.xlane.xlu0 %288
    %290 = vadd.xlane.f32.xlu0 %v234
    %v291 = vpop.xlane.xlu0 %290
    %292 = vadd.xlane.f32.xlu0 %v235
    %v293 = vpop.xlane.xlu0 %292
    %294 = vadd.xlane.f32.xlu0 %v236
    %v295 = vpop.xlane.xlu0 %294
    %296 = vadd.xlane.f32.xlu0 %v237
    %v297 = vpop.xlane.xlu0 %296
    %298 = vadd.xlane.f32.xlu0 %v238
    %v299 = vpop.xlane.xlu0 %298
    %300 = vadd.xlane.f32.xlu0 %v239
    %v301 = vpop.xlane.xlu0 %300
    %302 = vadd.xlane.f32.xlu0 %v240
    %v303 = vpop.xlane.xlu0 %302
    %304 = vadd.xlane.f32.xlu0 %v241
    %v305 = vpop.xlane.xlu0 %304
    %306 = vmatprep.subr.mxu0 0.0
    %307 = vmatpush1.xpose.msra.mxu0 %v82
    %308 = vmatprep.subr.mxu0 0.0
    %309 = vmatpush1.xpose.msra.mxu0 %v83
    %310 = vmatprep.subr.mxu0 0.0
    %311 = vmatpush1.xpose.msra.mxu0 %v84
    %312 = vmatprep.subr.mxu0 0.0
    %313 = vmatpush1.xpose.msra.mxu0 %v85
    %314 = vmatprep.subr.mxu0 0.0
    %315 = vmatpush1.xpose.msra.mxu0 %v86
    %316 = vmatprep.subr.mxu0 0.0
    %317 = vmatpush1.xpose.msra.mxu0 %v87
    %318 = vmatprep.subr.mxu0 0.0
    %319 = vmatpush1.xpose.msra.mxu0 %v88
    %320 = vmatprep.subr.mxu0 0.0
    %321 = vmatpush1.xpose.msra.mxu0 %v89
    %322 = vmatprep.subr.mxu0 0.0
    %323 = vmatpush1.xpose.msra.mxu0 %v90
    %324 = vmatprep.subr.mxu0 0.0
    %325 = vmatpush1.xpose.msra.mxu0 %v91
    %326 = vmatprep.subr.mxu0 0.0
    %327 = vmatpush1.xpose.msra.mxu0 %v92
    %328 = vmatprep.subr.mxu0 0.0
    %329 = vmatpush1.xpose.msra.mxu0 %v93
    %330 = vmatprep.subr.mxu0 0.0
    %331 = vmatpush1.xpose.msra.mxu0 %v94
    %332 = vmatprep.subr.mxu0 0.0
    %333 = vmatpush1.xpose.msra.mxu0 %v95
    %334 = vmatprep.subr.mxu0 0.0
    %335 = vmatpush1.xpose.msra.mxu0 %v96
    %336 = vmatprep.subr.mxu0 0.0
    %337 = vmatpush1.xpose.msra.mxu0 %v97
    %338 = vmatprep.subr.mxu0 0.0
    %339 = vmatpush1.xpose.msra.mxu0 %v98
    %340 = vmatprep.subr.mxu0 0.0
    %341 = vmatpush1.xpose.msra.mxu0 %v99
    %342 = vmatprep.subr.mxu0 0.0
    %343 = vmatpush1.xpose.msra.mxu0 %v100
    %344 = vmatprep.subr.mxu0 0.0
    %345 = vmatpush1.xpose.msra.mxu0 %v101
    %346 = vmatprep.subr.mxu0 0.0
    %347 = vmatpush1.xpose.msra.mxu0 %v102
    %348 = vmatprep.subr.mxu0 0.0
    %349 = vmatpush1.xpose.msra.mxu0 %v103
    %350 = vmatprep.subr.mxu0 0.0
    %351 = vmatpush1.xpose.msra.mxu0 %v104
    %352 = vmatprep.subr.mxu0 0.0
    %353 = vmatpush1.xpose.msra.mxu0 %v105
    %354 = vmatprep.subr.mxu0 0.0
    %355 = vmatpush1.xpose.msra.mxu0 %v106
    %356 = vmatprep.subr.mxu0 0.0
    %357 = vmatpush1.xpose.msra.mxu0 %v107
    %358 = vmatprep.subr.mxu0 0.0
    %359 = vmatpush1.xpose.msra.mxu0 %v108
    %360 = vmatprep.subr.mxu0 0.0
    %361 = vmatpush1.xpose.msra.mxu0 %v109
    %362 = vmatprep.subr.mxu0 0.0
    %363 = vmatpush1.xpose.msra.mxu0 %v110
    %364 = vmatprep.subr.mxu0 0.0
    %365 = vmatpush1.xpose.msra.mxu0 %v111
    %366 = vmatprep.subr.mxu0 0.0
    %367 = vmatpush1.xpose.msra.mxu0 %v112
    %368 = vmatprep.subr.mxu0 0.0
    %369 = vmatpush1.xpose.msra.mxu0 %v113
    %370 = vmatprep.mubr.f32.mxu0 0.0
    %371 = vmatmul.mubr.f32.gmra.mrb[0].mxu0 %v50
    %v372 = vpop.f32.mrb[0].mxu0
    %v373 = vadd.f32 0.0, %v372
    %v374 = vpop.f32.mrb[0].mxu0
    %v375 = vadd.f32 0.0, %v374
    %376 = vmatprep.mubr.f32.mxu0 0.0
    %377 = vmatmul.mubr.f32.gmra.mrb[0].mxu0 %v51
    %v378 = vpop.f32.mrb[0].mxu0
    %v379 = vadd.f32 0.0, %v378
    %v380 = vpop.f32.mrb[0].mxu0
    %v381 = vadd.f32 0.0, %v380
    %382 = vmatprep.mubr.f32.mxu0 0.0
    %383 = vmatmul.mubr.f32.gmra.mrb[0].mxu0 %v52
    %v384 = vpop.f32.mrb[0].mxu0
    %v385 = vadd.f32 0.0, %v384
    %v386 = vpop.f32.mrb[0].mxu0
    %v387 = vadd.f32 0.0, %v386
    %388 = vmatprep.mubr.f32.mxu0 0.0
    %389 = vmatmul.mubr.f32.gmra.mrb[0].mxu0 %v53
    %v390 = vpop.f32.mrb[0].mxu0
    %v391 = vadd.f32 0.0, %v390
    %v392 = vpop.f32.mrb[0].mxu0
    %v393 = vadd.f32 0.0, %v392
    %394 = vmatprep.mubr.f32.mxu0 0.0
    %395 = vmatmul.mubr.f32.gmra.mrb[0].mxu0 %v54
    %v396 = vpop.f32.mrb[0].mxu0
    %v397 = vadd.f32 0.0, %v396
    %v398 = vpop.f32.mrb[0].mxu0
    %v399 = vadd.f32 0.0, %v398
    %400 = vmatprep.mubr.f32.mxu0 0.0
    %401 = vmatmul.mubr.f32.gmra.mrb[0].mxu0 %v55
    %v402 = vpop.f32.mrb[0].mxu0
    %v403 = vadd.f32 0.0, %v402
    %v404 = vpop.f32.mrb[0].mxu0
    %v405 = vadd.f32 0.0, %v404
    %406 = vmatprep.mubr.f32.mxu0 0.0
    %407 = vmatmul.mubr.f32.gmra.mrb[0].mxu0 %v56
    %v408 = vpop.f32.mrb[0].mxu0
    %v409 = vadd.f32 0.0, %v408
    %v410 = vpop.f32.mrb[0].mxu0
    %v411 = vadd.f32 0.0, %v410
    %412 = vmatprep.mubr.f32.mxu0 0.0
    %413 = vmatmul.mubr.f32.gmra.mrb[0].mxu0 %v57
    %v414 = vpop.f32.mrb[0].mxu0
    %v415 = vadd.f32 0.0, %v414
    %v416 = vpop.f32.mrb[0].mxu0
    %v417 = vadd.f32 0.0, %v416
    %418 = vmatprep.mubr.f32.mxu0 0.0
    %419 = vmatmul.mubr.f32.gmra.mrb[0].mxu0 %v58
    %v420 = vpop.f32.mrb[0].mxu0
    %v421 = vadd.f32 0.0, %v420
    %v422 = vpop.f32.mrb[0].mxu0
    %v423 = vadd.f32 0.0, %v422
    %424 = vmatprep.mubr.f32.mxu0 0.0
    %425 = vmatmul.mubr.f32.gmra.mrb[0].mxu0 %v59
    %v426 = vpop.f32.mrb[0].mxu0
    %v427 = vadd.f32 0.0, %v426
    %v428 = vpop.f32.mrb[0].mxu0
    %v429 = vadd.f32 0.0, %v428
    %430 = vmatprep.mubr.f32.mxu0 0.0
    %431 = vmatmul.mubr.f32.gmra.mrb[0].mxu0 %v60
    %v432 = vpop.f32.mrb[0].mxu0
    %v433 = vadd.f32 0.0, %v432
    %v434 = vpop.f32.mrb[0].mxu0
    %v435 = vadd.f32 0.0, %v434
    %436 = vmatprep.mubr.f32.mxu0 0.0
    %437 = vmatmul.mubr.f32.gmra.mrb[0].mxu0 %v61
    %v438 = vpop.f32.mrb[0].mxu0
    %v439 = vadd.f32 0.0, %v438
    %v440 = vpop.f32.mrb[0].mxu0
    %v441 = vadd.f32 0.0, %v440
    %442 = vmatprep.mubr.f32.mxu0 0.0
    %443 = vmatmul.mubr.f32.gmra.mrb[0].mxu0 %v62
    %v444 = vpop.f32.mrb[0].mxu0
    %v445 = vadd.f32 0.0, %v444
    %v446 = vpop.f32.mrb[0].mxu0
    %v447 = vadd.f32 0.0, %v446
    %448 = vmatprep.mubr.f32.mxu0 0.0
    %449 = vmatmul.mubr.f32.gmra.mrb[0].mxu0 %v63
    %v450 = vpop.f32.mrb[0].mxu0
    %v451 = vadd.f32 0.0, %v450
    %v452 = vpop.f32.mrb[0].mxu0
    %v453 = vadd.f32 0.0, %v452
    %454 = vmatprep.mubr.f32.mxu0 0.0
    %455 = vmatmul.mubr.f32.gmra.mrb[0].mxu0 %v64
    %v456 = vpop.f32.mrb[0].mxu0
    %v457 = vadd.f32 0.0, %v456
    %v458 = vpop.f32.mrb[0].mxu0
    %v459 = vadd.f32 0.0, %v458
    %460 = vmatprep.mubr.f32.mxu0 0.0
    %461 = vmatmul.mubr.f32.gmra.mrb[0].mxu0 %v65
    %v462 = vpop.f32.mrb[0].mxu0
    %v463 = vadd.f32 0.0, %v462
    %v464 = vpop.f32.mrb[0].mxu0
    %v465 = vadd.f32 0.0, %v464
    %466 = vmatprep.mubr.f32.mxu0 0.0
    %467 = vmatmul.mubr.f32.gmra.mrb[0].mxu0 %v66
    %v468 = vpop.f32.mrb[0].mxu0
    %v469 = vadd.f32 0.0, %v468
    %v470 = vpop.f32.mrb[0].mxu0
    %v471 = vadd.f32 0.0, %v470
    %472 = vmatprep.mubr.f32.mxu0 0.0
    %473 = vmatmul.mubr.f32.gmra.mrb[0].mxu0 %v67
    %v474 = vpop.f32.mrb[0].mxu0
    %v475 = vadd.f32 0.0, %v474
    %v476 = vpop.f32.mrb[0].mxu0
    %v477 = vadd.f32 0.0, %v476
    %478 = vmatprep.mubr.f32.mxu0 0.0
    %479 = vmatmul.mubr.f32.gmra.mrb[0].mxu0 %v68
    %v480 = vpop.f32.mrb[0].mxu0
    %v481 = vadd.f32 0.0, %v480
    %v482 = vpop.f32.mrb[0].mxu0
    %v483 = vadd.f32 0.0, %v482
    %484 = vmatprep.mubr.f32.mxu0 0.0
    %485 = vmatmul.mubr.f32.gmra.mrb[0].mxu0 %v69
    %v486 = vpop.f32.mrb[0].mxu0
    %v487 = vadd.f32 0.0, %v486
    %v488 = vpop.f32.mrb[0].mxu0
    %v489 = vadd.f32 0.0, %v488
    %490 = vmatprep.mubr.f32.mxu0 0.0
    %491 = vmatmul.mubr.f32.gmra.mrb[0].mxu0 %v70
    %v492 = vpop.f32.mrb[0].mxu0
    %v493 = vadd.f32 0.0, %v492
    %v494 = vpop.f32.mrb[0].mxu0
    %v495 = vadd.f32 0.0, %v494
    %496 = vmatprep.mubr.f32.mxu0 0.0
    %497 = vmatmul.mubr.f32.gmra.mrb[0].mxu0 %v71
    %v498 = vpop.f32.mrb[0].mxu0
    %v499 = vadd.f32 0.0, %v498
    %v500 = vpop.f32.mrb[0].mxu0
    %v501 = vadd.f32 0.0, %v500
    %502 = vmatprep.mubr.f32.mxu0 0.0
    %503 = vmatmul.mubr.f32.gmra.mrb[0].mxu0 %v72
    %v504 = vpop.f32.mrb[0].mxu0
    %v505 = vadd.f32 0.0, %v504
    %v506 = vpop.f32.mrb[0].mxu0
    %v507 = vadd.f32 0.0, %v506
    %508 = vmatprep.mubr.f32.mxu0 0.0
    %509 = vmatmul.mubr.f32.gmra.mrb[0].mxu0 %v73
    %v510 = vpop.f32.mrb[0].mxu0
    %v511 = vadd.f32 0.0, %v510
    %v512 = vpop.f32.mrb[0].mxu0
    %v513 = vadd.f32 0.0, %v512
    %514 = vmatprep.mubr.f32.mxu0 0.0
    %515 = vmatmul.mubr.f32.gmra.mrb[0].mxu0 %v74
    %v516 = vpop.f32.mrb[0].mxu0
    %v517 = vadd.f32 0.0, %v516
    %v518 = vpop.f32.mrb[0].mxu0
    %v519 = vadd.f32 0.0, %v518
    %520 = vmatprep.mubr.f32.mxu0 0.0
    %521 = vmatmul.mubr.f32.gmra.mrb[0].mxu0 %v75
    %v522 = vpop.f32.mrb[0].mxu0
    %v523 = vadd.f32 0.0, %v522
    %v524 = vpop.f32.mrb[0].mxu0
    %v525 = vadd.f32 0.0, %v524
    %526 = vmatprep.mubr.f32.mxu0 0.0
    %527 = vmatmul.mubr.f32.gmra.mrb[0].mxu0 %v76
    %v528 = vpop.f32.mrb[0].mxu0
    %v529 = vadd.f32 0.0, %v528
    %v530 = vpop.f32.mrb[0].mxu0
    %v531 = vadd.f32 0.0, %v530
    %532 = vmatprep.mubr.f32.mxu0 0.0
    %533 = vmatmul.mubr.f32.gmra.mrb[0].mxu0 %v77
    %v534 = vpop.f32.mrb[0].mxu0
    %v535 = vadd.f32 0.0, %v534
    %v536 = vpop.f32.mrb[0].mxu0
    %v537 = vadd.f32 0.0, %v536
    %538 = vmatprep.mubr.f32.mxu0 0.0
    %539 = vmatmul.mubr.f32.gmra.mrb[0].mxu0 %v78
    %v540 = vpop.f32.mrb[0].mxu0
    %v541 = vadd.f32 0.0, %v540
    %v542 = vpop.f32.mrb[0].mxu0
    %v543 = vadd.f32 0.0, %v542
    %544 = vmatprep.mubr.f32.mxu0 0.0
    %545 = vmatmul.mubr.f32.gmra.mrb[0].mxu0 %v79
    %v546 = vpop.f32.mrb[0].mxu0
    %v547 = vadd.f32 0.0, %v546
    %v548 = vpop.f32.mrb[0].mxu0
    %v549 = vadd.f32 0.0, %v548
    %550 = vmatprep.mubr.f32.mxu0 0.0
    %551 = vmatmul.mubr.f32.gmra.mrb[0].mxu0 %v80
    %v552 = vpop.f32.mrb[0].mxu0
    %v553 = vadd.f32 0.0, %v552
    %v554 = vpop.f32.mrb[0].mxu0
    %v555 = vadd.f32 0.0, %v554
    %556 = vmatprep.mubr.f32.mxu0 0.0
    %557 = vmatmul.mubr.f32.gmra.mrb[0].mxu0 %v81
    %v558 = vpop.f32.mrb[0].mxu0
    %v559 = vadd.f32 0.0, %v558
    %v560 = vpop.f32.mrb[0].mxu0
    %v561 = vadd.f32 0.0, %v560
    %562 = vdwg.mxu0
    %v595 = vlaneseq
    %v596 = vand.u32 %v595, 127
    %v597 = vlaneseq
    %v598 = vshrl.u32 %v597, 7
    %v599 = vsub.s32 %v596, %v598
    %v600 = vrot.slane %v243, %v599
    %v601 = vadd.s32 %v596, 4294967288
    %v602 = vlaneseq
    %v603 = vshrl.u32 %v602, 7
    %v604 = vsub.s32 %v601, %v603
    %v605 = vrot.slane %v245, %v604
    %vm606 = vcmask 130112
    %v607 = vsel %vm606, %v605, %v600
    %v608 = vadd.s32 %v596, 4294967280
    %v609 = vlaneseq
    %v610 = vshrl.u32 %v609, 7
    %v611 = vsub.s32 %v608, %v610
    %v612 = vrot.slane %v247, %v611
    %vm613 = vcmask 195712
    %v614 = vsel %vm613, %v612, %v607
    %v615 = vadd.s32 %v596, 4294967272
    %v616 = vlaneseq
    %v617 = vshrl.u32 %v616, 7
    %v618 = vsub.s32 %v615, %v617
    %v619 = vrot.slane %v249, %v618
    %vm620 = vcmask 261312
    %v621 = vsel %vm620, %v619, %v614
    %v622 = vadd.s32 %v596, 4294967264
    %v623 = vlaneseq
    %v624 = vshrl.u32 %v623, 7
    %v625 = vsub.s32 %v622, %v624
    %v626 = vrot.slane %v251, %v625
    %vm627 = vcmask 326912
    %v628 = vsel %vm627, %v626, %v621
    %v629 = vadd.s32 %v596, 4294967256
    %v630 = vlaneseq
    %v631 = vshrl.u32 %v630, 7
    %v632 = vsub.s32 %v629, %v631
    %v633 = vrot.slane %v253, %v632
    %vm634 = vcmask 392512
    %v635 = vsel %vm634, %v633, %v628
    %v636 = vadd.s32 %v596, 4294967248
    %v637 = vlaneseq
    %v638 = vshrl.u32 %v637, 7
    %v639 = vsub.s32 %v636, %v638
    %v640 = vrot.slane %v255, %v639
    %vm641 = vcmask 458112
    %v642 = vsel %vm641, %v640, %v635
    %v643 = vadd.s32 %v596, 4294967240
    %v644 = vlaneseq
    %v645 = vshrl.u32 %v644, 7
    %v646 = vsub.s32 %v643, %v645
    %v647 = vrot.slane %v257, %v646
    %vm648 = vcmask 523712
    %v649 = vsel %vm648, %v647, %v642
    %v650 = vadd.s32 %v596, 4294967232
    %v651 = vlaneseq
    %v652 = vshrl.u32 %v651, 7
    %v653 = vsub.s32 %v650, %v652
    %v654 = vrot.slane %v259, %v653
    %vm655 = vcmask 589312
    %v656 = vsel %vm655, %v654, %v649
    %v657 = vadd.s32 %v596, 4294967224
    %v658 = vlaneseq
    %v659 = vshrl.u32 %v658, 7
    %v660 = vsub.s32 %v657, %v659
    %v661 = vrot.slane %v261, %v660
    %vm662 = vcmask 654912
    %v663 = vsel %vm662, %v661, %v656
    %v664 = vadd.s32 %v596, 4294967216
    %v665 = vlaneseq
    %v666 = vshrl.u32 %v665, 7
    %v667 = vsub.s32 %v664, %v666
    %v668 = vrot.slane %v263, %v667
    %vm669 = vcmask 720512
    %v670 = vsel %vm669, %v668, %v663
    %v671 = vadd.s32 %v596, 4294967208
    %v672 = vlaneseq
    %v673 = vshrl.u32 %v672, 7
    %v674 = vsub.s32 %v671, %v673
    %v675 = vrot.slane %v265, %v674
    %vm676 = vcmask 786112
    %v677 = vsel %vm676, %v675, %v670
    %v678 = vadd.s32 %v596, 4294967200
    %v679 = vlaneseq
    %v680 = vshrl.u32 %v679, 7
    %v681 = vsub.s32 %v678, %v680
    %v682 = vrot.slane %v267, %v681
    %vm683 = vcmask 851712
    %v684 = vsel %vm683, %v682, %v677
    %v685 = vadd.s32 %v596, 4294967192
    %v686 = vlaneseq
    %v687 = vshrl.u32 %v686, 7
    %v688 = vsub.s32 %v685, %v687
    %v689 = vrot.slane %v269, %v688
    %vm690 = vcmask 917312
    %v691 = vsel %vm690, %v689, %v684
    %v692 = vadd.s32 %v596, 4294967184
    %v693 = vlaneseq
    %v694 = vshrl.u32 %v693, 7
    %v695 = vsub.s32 %v692, %v694
    %v696 = vrot.slane %v271, %v695
    %vm697 = vcmask 982912
    %v698 = vsel %vm697, %v696, %v691
    %v699 = vadd.s32 %v596, 4294967176
    %v700 = vlaneseq
    %v701 = vshrl.u32 %v700, 7
    %v702 = vsub.s32 %v699, %v701
    %v703 = vrot.slane %v273, %v702
    %vm704 = vcmask 1048512
    %v705 = vsel %vm704, %v703, %v698
    %v706 = vlaneseq
    %v707 = vshrl.u32 %v706, 7
    %v708 = vsub.s32 %v596, %v707
    %v709 = vrot.slane %v275, %v708
    %v710 = vlaneseq
    %v711 = vshrl.u32 %v710, 7
    %v712 = vsub.s32 %v601, %v711
    %v713 = vrot.slane %v277, %v712
    %v714 = vsel %vm606, %v713, %v709
    %v715 = vlaneseq
    %v716 = vshrl.u32 %v715, 7
    %v717 = vsub.s32 %v608, %v716
    %v718 = vrot.slane %v279, %v717
    %v719 = vsel %vm613, %v718, %v714
    %v720 = vlaneseq
    %v721 = vshrl.u32 %v720, 7
    %v722 = vsub.s32 %v615, %v721
    %v723 = vrot.slane %v281, %v722
    %v724 = vsel %vm620, %v723, %v719
    %v725 = vlaneseq
    %v726 = vshrl.u32 %v725, 7
    %v727 = vsub.s32 %v622, %v726
    %v728 = vrot.slane %v283, %v727
    %v729 = vsel %vm627, %v728, %v724
    %v730 = vlaneseq
    %v731 = vshrl.u32 %v730, 7
    %v732 = vsub.s32 %v629, %v731
    %v733 = vrot.slane %v285, %v732
    %v734 = vsel %vm634, %v733, %v729
    %v735 = vlaneseq
    %v736 = vshrl.u32 %v735, 7
    %v737 = vsub.s32 %v636, %v736
    %v738 = vrot.slane %v287, %v737
    %v739 = vsel %vm641, %v738, %v734
    %v740 = vlaneseq
    %v741 = vshrl.u32 %v740, 7
    %v742 = vsub.s32 %v643, %v741
    %v743 = vrot.slane %v289, %v742
    %v744 = vsel %vm648, %v743, %v739
    %v745 = vlaneseq
    %v746 = vshrl.u32 %v745, 7
    %v747 = vsub.s32 %v650, %v746
    %v748 = vrot.slane %v291, %v747
    %v749 = vsel %vm655, %v748, %v744
    %v750 = vlaneseq
    %v751 = vshrl.u32 %v750, 7
    %v752 = vsub.s32 %v657, %v751
    %v753 = vrot.slane %v293, %v752
    %v754 = vsel %vm662, %v753, %v749
    %v755 = vlaneseq
    %v756 = vshrl.u32 %v755, 7
    %v757 = vsub.s32 %v664, %v756
    %v758 = vrot.slane %v295, %v757
    %v759 = vsel %vm669, %v758, %v754
    %v760 = vlaneseq
    %v761 = vshrl.u32 %v760, 7
    %v762 = vsub.s32 %v671, %v761
    %v763 = vrot.slane %v297, %v762
    %v764 = vsel %vm676, %v763, %v759
    %v765 = vlaneseq
    %v766 = vshrl.u32 %v765, 7
    %v767 = vsub.s32 %v678, %v766
    %v768 = vrot.slane %v299, %v767
    %v769 = vsel %vm683, %v768, %v764
    %v770 = vlaneseq
    %v771 = vshrl.u32 %v770, 7
    %v772 = vsub.s32 %v685, %v771
    %v773 = vrot.slane %v301, %v772
    %v774 = vsel %vm690, %v773, %v769
    %v775 = vlaneseq
    %v776 = vshrl.u32 %v775, 7
    %v777 = vsub.s32 %v692, %v776
    %v778 = vrot.slane %v303, %v777
    %v779 = vsel %vm697, %v778, %v774
    %v780 = vlaneseq
    %v781 = vshrl.u32 %v780, 7
    %v782 = vsub.s32 %v699, %v781
    %v783 = vrot.slane %v305, %v782
    %v784 = vsel %vm704, %v783, %v779
    %vm785 = vcmask 1042434
    %v786 = vsel %vm785, %v705, %v705
    %vm787 = vcmask 1043459
    %v788 = vsel %vm787, %v705, %v786
    %vm789 = vcmask 1044484
    %v790 = vsel %vm789, %v705, %v788
    %vm791 = vcmask 1045509
    %v792 = vsel %vm791, %v705, %v790
    %vm793 = vcmask 1046534
    %v794 = vsel %vm793, %v705, %v792
    %vm795 = vcmask 1047559
    %v796 = vsel %vm795, %v705, %v794
    %v797 = vsel %vm785, %v784, %v784
    %v798 = vsel %vm787, %v784, %v797
    %v799 = vsel %vm789, %v784, %v798
    %v800 = vsel %vm791, %v784, %v799
    %v801 = vsel %vm793, %v784, %v800
    %v802 = vsel %vm795, %v784, %v801
    %v805 = vadd.f32 %v147, %v796
    %v806 = vadd.f32 %v147, %v802
    %v807 = vadd.f32 %v149, %v796
    %v808 = vadd.f32 %v149, %v802
    %v809 = vadd.f32 %v151, %v796
    %v810 = vadd.f32 %v151, %v802
    %v811 = vadd.f32 %v153, %v796
    %v812 = vadd.f32 %v153, %v802
    %v813 = vadd.f32 %v155, %v796
    %v814 = vadd.f32 %v155, %v802
    %v815 = vadd.f32 %v157, %v796
    %v816 = vadd.f32 %v157, %v802
    %v817 = vadd.f32 %v159, %v796
    %v818 = vadd.f32 %v159, %v802
    %v819 = vadd.f32 %v161, %v796
    %v820 = vadd.f32 %v161, %v802
    %v821 = vadd.f32 %v163, %v796
    %v822 = vadd.f32 %v163, %v802
    %v823 = vadd.f32 %v165, %v796
    %v824 = vadd.f32 %v165, %v802
    %v825 = vadd.f32 %v167, %v796
    %v826 = vadd.f32 %v167, %v802
    %v827 = vadd.f32 %v169, %v796
    %v828 = vadd.f32 %v169, %v802
    %v829 = vadd.f32 %v171, %v796
    %v830 = vadd.f32 %v171, %v802
    %v831 = vadd.f32 %v173, %v796
    %v832 = vadd.f32 %v173, %v802
    %v833 = vadd.f32 %v175, %v796
    %v834 = vadd.f32 %v175, %v802
    %v835 = vadd.f32 %v177, %v796
    %v836 = vadd.f32 %v177, %v802
    %v837 = vadd.f32 %v179, %v796
    %v838 = vadd.f32 %v179, %v802
    %v839 = vadd.f32 %v181, %v796
    %v840 = vadd.f32 %v181, %v802
    %v841 = vadd.f32 %v183, %v796
    %v842 = vadd.f32 %v183, %v802
    %v843 = vadd.f32 %v185, %v796
    %v844 = vadd.f32 %v185, %v802
    %v845 = vadd.f32 %v187, %v796
    %v846 = vadd.f32 %v187, %v802
    %v847 = vadd.f32 %v189, %v796
    %v848 = vadd.f32 %v189, %v802
    %v849 = vadd.f32 %v191, %v796
    %v850 = vadd.f32 %v191, %v802
    %v851 = vadd.f32 %v193, %v796
    %v852 = vadd.f32 %v193, %v802
    %v853 = vadd.f32 %v195, %v796
    %v854 = vadd.f32 %v195, %v802
    %v855 = vadd.f32 %v197, %v796
    %v856 = vadd.f32 %v197, %v802
    %v857 = vadd.f32 %v199, %v796
    %v858 = vadd.f32 %v199, %v802
    %v859 = vadd.f32 %v201, %v796
    %v860 = vadd.f32 %v201, %v802
    %v861 = vadd.f32 %v203, %v796
    %v862 = vadd.f32 %v203, %v802
    %v863 = vadd.f32 %v205, %v796
    %v864 = vadd.f32 %v205, %v802
    %v865 = vadd.f32 %v207, %v796
    %v866 = vadd.f32 %v207, %v802
    %v867 = vadd.f32 %v209, %v796
    %v868 = vadd.f32 %v209, %v802
    %v869 = vmul.f32 %v373, 2.0
    %v870 = vmul.f32 %v375, 2.0
    %v871 = vmul.f32 %v379, 2.0
    %v872 = vmul.f32 %v381, 2.0
    %v873 = vmul.f32 %v385, 2.0
    %v874 = vmul.f32 %v387, 2.0
    %v875 = vmul.f32 %v391, 2.0
    %v876 = vmul.f32 %v393, 2.0
    %v877 = vmul.f32 %v397, 2.0
    %v878 = vmul.f32 %v399, 2.0
    %v879 = vmul.f32 %v403, 2.0
    %v880 = vmul.f32 %v405, 2.0
    %v881 = vmul.f32 %v409, 2.0
    %v882 = vmul.f32 %v411, 2.0
    %v883 = vmul.f32 %v415, 2.0
    %v884 = vmul.f32 %v417, 2.0
    %v885 = vmul.f32 %v421, 2.0
    %v886 = vmul.f32 %v423, 2.0
    %v887 = vmul.f32 %v427, 2.0
    %v888 = vmul.f32 %v429, 2.0
    %v889 = vmul.f32 %v433, 2.0
    %v890 = vmul.f32 %v435, 2.0
    %v891 = vmul.f32 %v439, 2.0
    %v892 = vmul.f32 %v441, 2.0
    %v893 = vmul.f32 %v445, 2.0
    %v894 = vmul.f32 %v447, 2.0
    %v895 = vmul.f32 %v451, 2.0
    %v896 = vmul.f32 %v453, 2.0
    %v897 = vmul.f32 %v457, 2.0
    %v898 = vmul.f32 %v459, 2.0
    %v899 = vmul.f32 %v463, 2.0
    %v900 = vmul.f32 %v465, 2.0
    %v901 = vmul.f32 %v469, 2.0
    %v902 = vmul.f32 %v471, 2.0
    %v903 = vmul.f32 %v475, 2.0
    %v904 = vmul.f32 %v477, 2.0
    %v905 = vmul.f32 %v481, 2.0
    %v906 = vmul.f32 %v483, 2.0
    %v907 = vmul.f32 %v487, 2.0
    %v908 = vmul.f32 %v489, 2.0
    %v909 = vmul.f32 %v493, 2.0
    %v910 = vmul.f32 %v495, 2.0
    %v911 = vmul.f32 %v499, 2.0
    %v912 = vmul.f32 %v501, 2.0
    %v913 = vmul.f32 %v505, 2.0
    %v914 = vmul.f32 %v507, 2.0
    %v915 = vmul.f32 %v511, 2.0
    %v916 = vmul.f32 %v513, 2.0
    %v917 = vmul.f32 %v517, 2.0
    %v918 = vmul.f32 %v519, 2.0
    %v919 = vmul.f32 %v523, 2.0
    %v920 = vmul.f32 %v525, 2.0
    %v921 = vmul.f32 %v529, 2.0
    %v922 = vmul.f32 %v531, 2.0
    %v923 = vmul.f32 %v535, 2.0
    %v924 = vmul.f32 %v537, 2.0
    %v925 = vmul.f32 %v541, 2.0
    %v926 = vmul.f32 %v543, 2.0
    %v927 = vmul.f32 %v547, 2.0
    %v928 = vmul.f32 %v549, 2.0
    %v929 = vmul.f32 %v553, 2.0
    %v930 = vmul.f32 %v555, 2.0
    %v931 = vmul.f32 %v559, 2.0
    %v932 = vmul.f32 %v561, 2.0
    %v933 = vsub.f32 %v805, %v869
    %v934 = vsub.f32 %v806, %v870
    %v935 = vsub.f32 %v807, %v871
    %v936 = vsub.f32 %v808, %v872
    %v937 = vsub.f32 %v809, %v873
    %v938 = vsub.f32 %v810, %v874
    %v939 = vsub.f32 %v811, %v875
    %v940 = vsub.f32 %v812, %v876
    %v941 = vsub.f32 %v813, %v877
    %v942 = vsub.f32 %v814, %v878
    %v943 = vsub.f32 %v815, %v879
    %v944 = vsub.f32 %v816, %v880
    %v945 = vsub.f32 %v817, %v881
    %v946 = vsub.f32 %v818, %v882
    %v947 = vsub.f32 %v819, %v883
    %v948 = vsub.f32 %v820, %v884
    %v949 = vsub.f32 %v821, %v885
    %v950 = vsub.f32 %v822, %v886
    %v951 = vsub.f32 %v823, %v887
    %v952 = vsub.f32 %v824, %v888
    %v953 = vsub.f32 %v825, %v889
    %v954 = vsub.f32 %v826, %v890
    %v955 = vsub.f32 %v827, %v891
    %v956 = vsub.f32 %v828, %v892
    %v957 = vsub.f32 %v829, %v893
    %v958 = vsub.f32 %v830, %v894
    %v959 = vsub.f32 %v831, %v895
    %v960 = vsub.f32 %v832, %v896
    %v961 = vsub.f32 %v833, %v897
    %v962 = vsub.f32 %v834, %v898
    %v963 = vsub.f32 %v835, %v899
    %v964 = vsub.f32 %v836, %v900
    %v965 = vsub.f32 %v837, %v901
    %v966 = vsub.f32 %v838, %v902
    %v967 = vsub.f32 %v839, %v903
    %v968 = vsub.f32 %v840, %v904
    %v969 = vsub.f32 %v841, %v905
    %v970 = vsub.f32 %v842, %v906
    %v971 = vsub.f32 %v843, %v907
    %v972 = vsub.f32 %v844, %v908
    %v973 = vsub.f32 %v845, %v909
    %v974 = vsub.f32 %v846, %v910
    %v975 = vsub.f32 %v847, %v911
    %v976 = vsub.f32 %v848, %v912
    %v977 = vsub.f32 %v849, %v913
    %v978 = vsub.f32 %v850, %v914
    %v979 = vsub.f32 %v851, %v915
    %v980 = vsub.f32 %v852, %v916
    %v981 = vsub.f32 %v853, %v917
    %v982 = vsub.f32 %v854, %v918
    %v983 = vsub.f32 %v855, %v919
    %v984 = vsub.f32 %v856, %v920
    %v985 = vsub.f32 %v857, %v921
    %v986 = vsub.f32 %v858, %v922
    %v987 = vsub.f32 %v859, %v923
    %v988 = vsub.f32 %v860, %v924
    %v989 = vsub.f32 %v861, %v925
    %v990 = vsub.f32 %v862, %v926
    %v991 = vsub.f32 %v863, %v927
    %v992 = vsub.f32 %v864, %v928
    %v993 = vsub.f32 %v865, %v929
    %v994 = vsub.f32 %v866, %v930
    %v995 = vsub.f32 %v867, %v931
    %v996 = vsub.f32 %v868, %v932
    %v997 = vmax.f32 %v933, 0.0
    %v998 = vmax.f32 %v934, 0.0
    %v999 = vmax.f32 %v935, 0.0
    %v1000 = vmax.f32 %v936, 0.0
    %v1001 = vmax.f32 %v937, 0.0
    %v1002 = vmax.f32 %v938, 0.0
    %v1003 = vmax.f32 %v939, 0.0
    %v1004 = vmax.f32 %v940, 0.0
    %v1005 = vmax.f32 %v941, 0.0
    %v1006 = vmax.f32 %v942, 0.0
    %v1007 = vmax.f32 %v943, 0.0
    %v1008 = vmax.f32 %v944, 0.0
    %v1009 = vmax.f32 %v945, 0.0
    %v1010 = vmax.f32 %v946, 0.0
    %v1011 = vmax.f32 %v947, 0.0
    %v1012 = vmax.f32 %v948, 0.0
    %v1013 = vmax.f32 %v949, 0.0
    %v1014 = vmax.f32 %v950, 0.0
    %v1015 = vmax.f32 %v951, 0.0
    %v1016 = vmax.f32 %v952, 0.0
    %v1017 = vmax.f32 %v953, 0.0
    %v1018 = vmax.f32 %v954, 0.0
    %v1019 = vmax.f32 %v955, 0.0
    %v1020 = vmax.f32 %v956, 0.0
    %v1021 = vmax.f32 %v957, 0.0
    %v1022 = vmax.f32 %v958, 0.0
    %v1023 = vmax.f32 %v959, 0.0
    %v1024 = vmax.f32 %v960, 0.0
    %v1025 = vmax.f32 %v961, 0.0
    %v1026 = vmax.f32 %v962, 0.0
    %v1027 = vmax.f32 %v963, 0.0
    %v1028 = vmax.f32 %v964, 0.0
    %v1029 = vmax.f32 %v965, 0.0
    %v1030 = vmax.f32 %v966, 0.0
    %v1031 = vmax.f32 %v967, 0.0
    %v1032 = vmax.f32 %v968, 0.0
    %v1033 = vmax.f32 %v969, 0.0
    %v1034 = vmax.f32 %v970, 0.0
    %v1035 = vmax.f32 %v971, 0.0
    %v1036 = vmax.f32 %v972, 0.0
    %v1037 = vmax.f32 %v973, 0.0
    %v1038 = vmax.f32 %v974, 0.0
    %v1039 = vmax.f32 %v975, 0.0
    %v1040 = vmax.f32 %v976, 0.0
    %v1041 = vmax.f32 %v977, 0.0
    %v1042 = vmax.f32 %v978, 0.0
    %v1043 = vmax.f32 %v979, 0.0
    %v1044 = vmax.f32 %v980, 0.0
    %v1045 = vmax.f32 %v981, 0.0
    %v1046 = vmax.f32 %v982, 0.0
    %v1047 = vmax.f32 %v983, 0.0
    %v1048 = vmax.f32 %v984, 0.0
    %v1049 = vmax.f32 %v985, 0.0
    %v1050 = vmax.f32 %v986, 0.0
    %v1051 = vmax.f32 %v987, 0.0
    %v1052 = vmax.f32 %v988, 0.0
    %v1053 = vmax.f32 %v989, 0.0
    %v1054 = vmax.f32 %v990, 0.0
    %v1055 = vmax.f32 %v991, 0.0
    %v1056 = vmax.f32 %v992, 0.0
    %v1057 = vmax.f32 %v993, 0.0
    %v1058 = vmax.f32 %v994, 0.0
    %v1059 = vmax.f32 %v995, 0.0
    %v1060 = vmax.f32 %v996, 0.0
    %v1061 = vrsqrt.pop %v997
    %v1062 = vmul.f32 %v997, %v1061
    %vm1063 = vcmp.eq.f32.partialorder %v997, inf
    %v1064 = vsel %vm1063, %v997, %v1062
    %vm1065 = vcmp.eq.f32.partialorder %v997, 0.0
    %v1066 = vand.u32 %v997, 2147483648
    %v1067 = vsel %vm1065, %v1066, %v1064
    %v1068 = vrsqrt.pop %v998
    %v1069 = vmul.f32 %v998, %v1068
    %vm1070 = vcmp.eq.f32.partialorder %v998, inf
    %v1071 = vsel %vm1070, %v998, %v1069
    %vm1072 = vcmp.eq.f32.partialorder %v998, 0.0
    %v1073 = vand.u32 %v998, 2147483648
    %v1074 = vsel %vm1072, %v1073, %v1071
    %v1075 = vrsqrt.pop %v999
    %v1076 = vmul.f32 %v999, %v1075
    %vm1077 = vcmp.eq.f32.partialorder %v999, inf
    %v1078 = vsel %vm1077, %v999, %v1076
    %vm1079 = vcmp.eq.f32.partialorder %v999, 0.0
    %v1080 = vand.u32 %v999, 2147483648
    %v1081 = vsel %vm1079, %v1080, %v1078
    %v1082 = vrsqrt.pop %v1000
    %v1083 = vmul.f32 %v1000, %v1082
    %vm1084 = vcmp.eq.f32.partialorder %v1000, inf
    %v1085 = vsel %vm1084, %v1000, %v1083
    %vm1086 = vcmp.eq.f32.partialorder %v1000, 0.0
    %v1087 = vand.u32 %v1000, 2147483648
    %v1088 = vsel %vm1086, %v1087, %v1085
    %v1089 = vrsqrt.pop %v1001
    %v1090 = vmul.f32 %v1001, %v1089
    %vm1091 = vcmp.eq.f32.partialorder %v1001, inf
    %v1092 = vsel %vm1091, %v1001, %v1090
    %vm1093 = vcmp.eq.f32.partialorder %v1001, 0.0
    %v1094 = vand.u32 %v1001, 2147483648
    %v1095 = vsel %vm1093, %v1094, %v1092
    %v1096 = vrsqrt.pop %v1002
    %v1097 = vmul.f32 %v1002, %v1096
    %vm1098 = vcmp.eq.f32.partialorder %v1002, inf
    %v1099 = vsel %vm1098, %v1002, %v1097
    %vm1100 = vcmp.eq.f32.partialorder %v1002, 0.0
    %v1101 = vand.u32 %v1002, 2147483648
    %v1102 = vsel %vm1100, %v1101, %v1099
    %v1103 = vrsqrt.pop %v1003
    %v1104 = vmul.f32 %v1003, %v1103
    %vm1105 = vcmp.eq.f32.partialorder %v1003, inf
    %v1106 = vsel %vm1105, %v1003, %v1104
    %vm1107 = vcmp.eq.f32.partialorder %v1003, 0.0
    %v1108 = vand.u32 %v1003, 2147483648
    %v1109 = vsel %vm1107, %v1108, %v1106
    %v1110 = vrsqrt.pop %v1004
    %v1111 = vmul.f32 %v1004, %v1110
    %vm1112 = vcmp.eq.f32.partialorder %v1004, inf
    %v1113 = vsel %vm1112, %v1004, %v1111
    %vm1114 = vcmp.eq.f32.partialorder %v1004, 0.0
    %v1115 = vand.u32 %v1004, 2147483648
    %v1116 = vsel %vm1114, %v1115, %v1113
    %v1117 = vrsqrt.pop %v1005
    %v1118 = vmul.f32 %v1005, %v1117
    %vm1119 = vcmp.eq.f32.partialorder %v1005, inf
    %v1120 = vsel %vm1119, %v1005, %v1118
    %vm1121 = vcmp.eq.f32.partialorder %v1005, 0.0
    %v1122 = vand.u32 %v1005, 2147483648
    %v1123 = vsel %vm1121, %v1122, %v1120
    %v1124 = vrsqrt.pop %v1006
    %v1125 = vmul.f32 %v1006, %v1124
    %vm1126 = vcmp.eq.f32.partialorder %v1006, inf
    %v1127 = vsel %vm1126, %v1006, %v1125
    %vm1128 = vcmp.eq.f32.partialorder %v1006, 0.0
    %v1129 = vand.u32 %v1006, 2147483648
    %v1130 = vsel %vm1128, %v1129, %v1127
    %v1131 = vrsqrt.pop %v1007
    %v1132 = vmul.f32 %v1007, %v1131
    %vm1133 = vcmp.eq.f32.partialorder %v1007, inf
    %v1134 = vsel %vm1133, %v1007, %v1132
    %vm1135 = vcmp.eq.f32.partialorder %v1007, 0.0
    %v1136 = vand.u32 %v1007, 2147483648
    %v1137 = vsel %vm1135, %v1136, %v1134
    %v1138 = vrsqrt.pop %v1008
    %v1139 = vmul.f32 %v1008, %v1138
    %vm1140 = vcmp.eq.f32.partialorder %v1008, inf
    %v1141 = vsel %vm1140, %v1008, %v1139
    %vm1142 = vcmp.eq.f32.partialorder %v1008, 0.0
    %v1143 = vand.u32 %v1008, 2147483648
    %v1144 = vsel %vm1142, %v1143, %v1141
    %v1145 = vrsqrt.pop %v1009
    %v1146 = vmul.f32 %v1009, %v1145
    %vm1147 = vcmp.eq.f32.partialorder %v1009, inf
    %v1148 = vsel %vm1147, %v1009, %v1146
    %vm1149 = vcmp.eq.f32.partialorder %v1009, 0.0
    %v1150 = vand.u32 %v1009, 2147483648
    %v1151 = vsel %vm1149, %v1150, %v1148
    %v1152 = vrsqrt.pop %v1010
    %v1153 = vmul.f32 %v1010, %v1152
    %vm1154 = vcmp.eq.f32.partialorder %v1010, inf
    %v1155 = vsel %vm1154, %v1010, %v1153
    %vm1156 = vcmp.eq.f32.partialorder %v1010, 0.0
    %v1157 = vand.u32 %v1010, 2147483648
    %v1158 = vsel %vm1156, %v1157, %v1155
    %v1159 = vrsqrt.pop %v1011
    %v1160 = vmul.f32 %v1011, %v1159
    %vm1161 = vcmp.eq.f32.partialorder %v1011, inf
    %v1162 = vsel %vm1161, %v1011, %v1160
    %vm1163 = vcmp.eq.f32.partialorder %v1011, 0.0
    %v1164 = vand.u32 %v1011, 2147483648
    %v1165 = vsel %vm1163, %v1164, %v1162
    %v1166 = vrsqrt.pop %v1012
    %v1167 = vmul.f32 %v1012, %v1166
    %vm1168 = vcmp.eq.f32.partialorder %v1012, inf
    %v1169 = vsel %vm1168, %v1012, %v1167
    %vm1170 = vcmp.eq.f32.partialorder %v1012, 0.0
    %v1171 = vand.u32 %v1012, 2147483648
    %v1172 = vsel %vm1170, %v1171, %v1169
    %v1173 = vrsqrt.pop %v1013
    %v1174 = vmul.f32 %v1013, %v1173
    %vm1175 = vcmp.eq.f32.partialorder %v1013, inf
    %v1176 = vsel %vm1175, %v1013, %v1174
    %vm1177 = vcmp.eq.f32.partialorder %v1013, 0.0
    %v1178 = vand.u32 %v1013, 2147483648
    %v1179 = vsel %vm1177, %v1178, %v1176
    %v1180 = vrsqrt.pop %v1014
    %v1181 = vmul.f32 %v1014, %v1180
    %vm1182 = vcmp.eq.f32.partialorder %v1014, inf
    %v1183 = vsel %vm1182, %v1014, %v1181
    %vm1184 = vcmp.eq.f32.partialorder %v1014, 0.0
    %v1185 = vand.u32 %v1014, 2147483648
    %v1186 = vsel %vm1184, %v1185, %v1183
    %v1187 = vrsqrt.pop %v1015
    %v1188 = vmul.f32 %v1015, %v1187
    %vm1189 = vcmp.eq.f32.partialorder %v1015, inf
    %v1190 = vsel %vm1189, %v1015, %v1188
    %vm1191 = vcmp.eq.f32.partialorder %v1015, 0.0
    %v1192 = vand.u32 %v1015, 2147483648
    %v1193 = vsel %vm1191, %v1192, %v1190
    %v1194 = vrsqrt.pop %v1016
    %v1195 = vmul.f32 %v1016, %v1194
    %vm1196 = vcmp.eq.f32.partialorder %v1016, inf
    %v1197 = vsel %vm1196, %v1016, %v1195
    %vm1198 = vcmp.eq.f32.partialorder %v1016, 0.0
    %v1199 = vand.u32 %v1016, 2147483648
    %v1200 = vsel %vm1198, %v1199, %v1197
    %v1201 = vrsqrt.pop %v1017
    %v1202 = vmul.f32 %v1017, %v1201
    %vm1203 = vcmp.eq.f32.partialorder %v1017, inf
    %v1204 = vsel %vm1203, %v1017, %v1202
    %vm1205 = vcmp.eq.f32.partialorder %v1017, 0.0
    %v1206 = vand.u32 %v1017, 2147483648
    %v1207 = vsel %vm1205, %v1206, %v1204
    %v1208 = vrsqrt.pop %v1018
    %v1209 = vmul.f32 %v1018, %v1208
    %vm1210 = vcmp.eq.f32.partialorder %v1018, inf
    %v1211 = vsel %vm1210, %v1018, %v1209
    %vm1212 = vcmp.eq.f32.partialorder %v1018, 0.0
    %v1213 = vand.u32 %v1018, 2147483648
    %v1214 = vsel %vm1212, %v1213, %v1211
    %v1215 = vrsqrt.pop %v1019
    %v1216 = vmul.f32 %v1019, %v1215
    %vm1217 = vcmp.eq.f32.partialorder %v1019, inf
    %v1218 = vsel %vm1217, %v1019, %v1216
    %vm1219 = vcmp.eq.f32.partialorder %v1019, 0.0
    %v1220 = vand.u32 %v1019, 2147483648
    %v1221 = vsel %vm1219, %v1220, %v1218
    %v1222 = vrsqrt.pop %v1020
    %v1223 = vmul.f32 %v1020, %v1222
    %vm1224 = vcmp.eq.f32.partialorder %v1020, inf
    %v1225 = vsel %vm1224, %v1020, %v1223
    %vm1226 = vcmp.eq.f32.partialorder %v1020, 0.0
    %v1227 = vand.u32 %v1020, 2147483648
    %v1228 = vsel %vm1226, %v1227, %v1225
    %v1229 = vrsqrt.pop %v1021
    %v1230 = vmul.f32 %v1021, %v1229
    %vm1231 = vcmp.eq.f32.partialorder %v1021, inf
    %v1232 = vsel %vm1231, %v1021, %v1230
    %vm1233 = vcmp.eq.f32.partialorder %v1021, 0.0
    %v1234 = vand.u32 %v1021, 2147483648
    %v1235 = vsel %vm1233, %v1234, %v1232
    %v1236 = vrsqrt.pop %v1022
    %v1237 = vmul.f32 %v1022, %v1236
    %vm1238 = vcmp.eq.f32.partialorder %v1022, inf
    %v1239 = vsel %vm1238, %v1022, %v1237
    %vm1240 = vcmp.eq.f32.partialorder %v1022, 0.0
    %v1241 = vand.u32 %v1022, 2147483648
    %v1242 = vsel %vm1240, %v1241, %v1239
    %v1243 = vrsqrt.pop %v1023
    %v1244 = vmul.f32 %v1023, %v1243
    %vm1245 = vcmp.eq.f32.partialorder %v1023, inf
    %v1246 = vsel %vm1245, %v1023, %v1244
    %vm1247 = vcmp.eq.f32.partialorder %v1023, 0.0
    %v1248 = vand.u32 %v1023, 2147483648
    %v1249 = vsel %vm1247, %v1248, %v1246
    %v1250 = vrsqrt.pop %v1024
    %v1251 = vmul.f32 %v1024, %v1250
    %vm1252 = vcmp.eq.f32.partialorder %v1024, inf
    %v1253 = vsel %vm1252, %v1024, %v1251
    %vm1254 = vcmp.eq.f32.partialorder %v1024, 0.0
    %v1255 = vand.u32 %v1024, 2147483648
    %v1256 = vsel %vm1254, %v1255, %v1253
    %v1257 = vrsqrt.pop %v1025
    %v1258 = vmul.f32 %v1025, %v1257
    %vm1259 = vcmp.eq.f32.partialorder %v1025, inf
    %v1260 = vsel %vm1259, %v1025, %v1258
    %vm1261 = vcmp.eq.f32.partialorder %v1025, 0.0
    %v1262 = vand.u32 %v1025, 2147483648
    %v1263 = vsel %vm1261, %v1262, %v1260
    %v1264 = vrsqrt.pop %v1026
    %v1265 = vmul.f32 %v1026, %v1264
    %vm1266 = vcmp.eq.f32.partialorder %v1026, inf
    %v1267 = vsel %vm1266, %v1026, %v1265
    %vm1268 = vcmp.eq.f32.partialorder %v1026, 0.0
    %v1269 = vand.u32 %v1026, 2147483648
    %v1270 = vsel %vm1268, %v1269, %v1267
    %v1271 = vrsqrt.pop %v1027
    %v1272 = vmul.f32 %v1027, %v1271
    %vm1273 = vcmp.eq.f32.partialorder %v1027, inf
    %v1274 = vsel %vm1273, %v1027, %v1272
    %vm1275 = vcmp.eq.f32.partialorder %v1027, 0.0
    %v1276 = vand.u32 %v1027, 2147483648
    %v1277 = vsel %vm1275, %v1276, %v1274
    %v1278 = vrsqrt.pop %v1028
    %v1279 = vmul.f32 %v1028, %v1278
    %vm1280 = vcmp.eq.f32.partialorder %v1028, inf
    %v1281 = vsel %vm1280, %v1028, %v1279
    %vm1282 = vcmp.eq.f32.partialorder %v1028, 0.0
    %v1283 = vand.u32 %v1028, 2147483648
    %v1284 = vsel %vm1282, %v1283, %v1281
    %v1285 = vrsqrt.pop %v1029
    %v1286 = vmul.f32 %v1029, %v1285
    %vm1287 = vcmp.eq.f32.partialorder %v1029, inf
    %v1288 = vsel %vm1287, %v1029, %v1286
    %vm1289 = vcmp.eq.f32.partialorder %v1029, 0.0
    %v1290 = vand.u32 %v1029, 2147483648
    %v1291 = vsel %vm1289, %v1290, %v1288
    %v1292 = vrsqrt.pop %v1030
    %v1293 = vmul.f32 %v1030, %v1292
    %vm1294 = vcmp.eq.f32.partialorder %v1030, inf
    %v1295 = vsel %vm1294, %v1030, %v1293
    %vm1296 = vcmp.eq.f32.partialorder %v1030, 0.0
    %v1297 = vand.u32 %v1030, 2147483648
    %v1298 = vsel %vm1296, %v1297, %v1295
    %v1299 = vrsqrt.pop %v1031
    %v1300 = vmul.f32 %v1031, %v1299
    %vm1301 = vcmp.eq.f32.partialorder %v1031, inf
    %v1302 = vsel %vm1301, %v1031, %v1300
    %vm1303 = vcmp.eq.f32.partialorder %v1031, 0.0
    %v1304 = vand.u32 %v1031, 2147483648
    %v1305 = vsel %vm1303, %v1304, %v1302
    %v1306 = vrsqrt.pop %v1032
    %v1307 = vmul.f32 %v1032, %v1306
    %vm1308 = vcmp.eq.f32.partialorder %v1032, inf
    %v1309 = vsel %vm1308, %v1032, %v1307
    %vm1310 = vcmp.eq.f32.partialorder %v1032, 0.0
    %v1311 = vand.u32 %v1032, 2147483648
    %v1312 = vsel %vm1310, %v1311, %v1309
    %v1313 = vrsqrt.pop %v1033
    %v1314 = vmul.f32 %v1033, %v1313
    %vm1315 = vcmp.eq.f32.partialorder %v1033, inf
    %v1316 = vsel %vm1315, %v1033, %v1314
    %vm1317 = vcmp.eq.f32.partialorder %v1033, 0.0
    %v1318 = vand.u32 %v1033, 2147483648
    %v1319 = vsel %vm1317, %v1318, %v1316
    %v1320 = vrsqrt.pop %v1034
    %v1321 = vmul.f32 %v1034, %v1320
    %vm1322 = vcmp.eq.f32.partialorder %v1034, inf
    %v1323 = vsel %vm1322, %v1034, %v1321
    %vm1324 = vcmp.eq.f32.partialorder %v1034, 0.0
    %v1325 = vand.u32 %v1034, 2147483648
    %v1326 = vsel %vm1324, %v1325, %v1323
    %v1327 = vrsqrt.pop %v1035
    %v1328 = vmul.f32 %v1035, %v1327
    %vm1329 = vcmp.eq.f32.partialorder %v1035, inf
    %v1330 = vsel %vm1329, %v1035, %v1328
    %vm1331 = vcmp.eq.f32.partialorder %v1035, 0.0
    %v1332 = vand.u32 %v1035, 2147483648
    %v1333 = vsel %vm1331, %v1332, %v1330
    %v1334 = vrsqrt.pop %v1036
    %v1335 = vmul.f32 %v1036, %v1334
    %vm1336 = vcmp.eq.f32.partialorder %v1036, inf
    %v1337 = vsel %vm1336, %v1036, %v1335
    %vm1338 = vcmp.eq.f32.partialorder %v1036, 0.0
    %v1339 = vand.u32 %v1036, 2147483648
    %v1340 = vsel %vm1338, %v1339, %v1337
    %v1341 = vrsqrt.pop %v1037
    %v1342 = vmul.f32 %v1037, %v1341
    %vm1343 = vcmp.eq.f32.partialorder %v1037, inf
    %v1344 = vsel %vm1343, %v1037, %v1342
    %vm1345 = vcmp.eq.f32.partialorder %v1037, 0.0
    %v1346 = vand.u32 %v1037, 2147483648
    %v1347 = vsel %vm1345, %v1346, %v1344
    %v1348 = vrsqrt.pop %v1038
    %v1349 = vmul.f32 %v1038, %v1348
    %vm1350 = vcmp.eq.f32.partialorder %v1038, inf
    %v1351 = vsel %vm1350, %v1038, %v1349
    %vm1352 = vcmp.eq.f32.partialorder %v1038, 0.0
    %v1353 = vand.u32 %v1038, 2147483648
    %v1354 = vsel %vm1352, %v1353, %v1351
    %v1355 = vrsqrt.pop %v1039
    %v1356 = vmul.f32 %v1039, %v1355
    %vm1357 = vcmp.eq.f32.partialorder %v1039, inf
    %v1358 = vsel %vm1357, %v1039, %v1356
    %vm1359 = vcmp.eq.f32.partialorder %v1039, 0.0
    %v1360 = vand.u32 %v1039, 2147483648
    %v1361 = vsel %vm1359, %v1360, %v1358
    %v1362 = vrsqrt.pop %v1040
    %v1363 = vmul.f32 %v1040, %v1362
    %vm1364 = vcmp.eq.f32.partialorder %v1040, inf
    %v1365 = vsel %vm1364, %v1040, %v1363
    %vm1366 = vcmp.eq.f32.partialorder %v1040, 0.0
    %v1367 = vand.u32 %v1040, 2147483648
    %v1368 = vsel %vm1366, %v1367, %v1365
    %v1369 = vrsqrt.pop %v1041
    %v1370 = vmul.f32 %v1041, %v1369
    %vm1371 = vcmp.eq.f32.partialorder %v1041, inf
    %v1372 = vsel %vm1371, %v1041, %v1370
    %vm1373 = vcmp.eq.f32.partialorder %v1041, 0.0
    %v1374 = vand.u32 %v1041, 2147483648
    %v1375 = vsel %vm1373, %v1374, %v1372
    %v1376 = vrsqrt.pop %v1042
    %v1377 = vmul.f32 %v1042, %v1376
    %vm1378 = vcmp.eq.f32.partialorder %v1042, inf
    %v1379 = vsel %vm1378, %v1042, %v1377
    %vm1380 = vcmp.eq.f32.partialorder %v1042, 0.0
    %v1381 = vand.u32 %v1042, 2147483648
    %v1382 = vsel %vm1380, %v1381, %v1379
    %v1383 = vrsqrt.pop %v1043
    %v1384 = vmul.f32 %v1043, %v1383
    %vm1385 = vcmp.eq.f32.partialorder %v1043, inf
    %v1386 = vsel %vm1385, %v1043, %v1384
    %vm1387 = vcmp.eq.f32.partialorder %v1043, 0.0
    %v1388 = vand.u32 %v1043, 2147483648
    %v1389 = vsel %vm1387, %v1388, %v1386
    %v1390 = vrsqrt.pop %v1044
    %v1391 = vmul.f32 %v1044, %v1390
    %vm1392 = vcmp.eq.f32.partialorder %v1044, inf
    %v1393 = vsel %vm1392, %v1044, %v1391
    %vm1394 = vcmp.eq.f32.partialorder %v1044, 0.0
    %v1395 = vand.u32 %v1044, 2147483648
    %v1396 = vsel %vm1394, %v1395, %v1393
    %v1397 = vrsqrt.pop %v1045
    %v1398 = vmul.f32 %v1045, %v1397
    %vm1399 = vcmp.eq.f32.partialorder %v1045, inf
    %v1400 = vsel %vm1399, %v1045, %v1398
    %vm1401 = vcmp.eq.f32.partialorder %v1045, 0.0
    %v1402 = vand.u32 %v1045, 2147483648
    %v1403 = vsel %vm1401, %v1402, %v1400
    %v1404 = vrsqrt.pop %v1046
    %v1405 = vmul.f32 %v1046, %v1404
    %vm1406 = vcmp.eq.f32.partialorder %v1046, inf
    %v1407 = vsel %vm1406, %v1046, %v1405
    %vm1408 = vcmp.eq.f32.partialorder %v1046, 0.0
    %v1409 = vand.u32 %v1046, 2147483648
    %v1410 = vsel %vm1408, %v1409, %v1407
    %v1411 = vrsqrt.pop %v1047
    %v1412 = vmul.f32 %v1047, %v1411
    %vm1413 = vcmp.eq.f32.partialorder %v1047, inf
    %v1414 = vsel %vm1413, %v1047, %v1412
    %vm1415 = vcmp.eq.f32.partialorder %v1047, 0.0
    %v1416 = vand.u32 %v1047, 2147483648
    %v1417 = vsel %vm1415, %v1416, %v1414
    %v1418 = vrsqrt.pop %v1048
    %v1419 = vmul.f32 %v1048, %v1418
    %vm1420 = vcmp.eq.f32.partialorder %v1048, inf
    %v1421 = vsel %vm1420, %v1048, %v1419
    %vm1422 = vcmp.eq.f32.partialorder %v1048, 0.0
    %v1423 = vand.u32 %v1048, 2147483648
    %v1424 = vsel %vm1422, %v1423, %v1421
    %v1425 = vrsqrt.pop %v1049
    %v1426 = vmul.f32 %v1049, %v1425
    %vm1427 = vcmp.eq.f32.partialorder %v1049, inf
    %v1428 = vsel %vm1427, %v1049, %v1426
    %vm1429 = vcmp.eq.f32.partialorder %v1049, 0.0
    %v1430 = vand.u32 %v1049, 2147483648
    %v1431 = vsel %vm1429, %v1430, %v1428
    %v1432 = vrsqrt.pop %v1050
    %v1433 = vmul.f32 %v1050, %v1432
    %vm1434 = vcmp.eq.f32.partialorder %v1050, inf
    %v1435 = vsel %vm1434, %v1050, %v1433
    %vm1436 = vcmp.eq.f32.partialorder %v1050, 0.0
    %v1437 = vand.u32 %v1050, 2147483648
    %v1438 = vsel %vm1436, %v1437, %v1435
    %v1439 = vrsqrt.pop %v1051
    %v1440 = vmul.f32 %v1051, %v1439
    %vm1441 = vcmp.eq.f32.partialorder %v1051, inf
    %v1442 = vsel %vm1441, %v1051, %v1440
    %vm1443 = vcmp.eq.f32.partialorder %v1051, 0.0
    %v1444 = vand.u32 %v1051, 2147483648
    %v1445 = vsel %vm1443, %v1444, %v1442
    %v1446 = vrsqrt.pop %v1052
    %v1447 = vmul.f32 %v1052, %v1446
    %vm1448 = vcmp.eq.f32.partialorder %v1052, inf
    %v1449 = vsel %vm1448, %v1052, %v1447
    %vm1450 = vcmp.eq.f32.partialorder %v1052, 0.0
    %v1451 = vand.u32 %v1052, 2147483648
    %v1452 = vsel %vm1450, %v1451, %v1449
    %v1453 = vrsqrt.pop %v1053
    %v1454 = vmul.f32 %v1053, %v1453
    %vm1455 = vcmp.eq.f32.partialorder %v1053, inf
    %v1456 = vsel %vm1455, %v1053, %v1454
    %vm1457 = vcmp.eq.f32.partialorder %v1053, 0.0
    %v1458 = vand.u32 %v1053, 2147483648
    %v1459 = vsel %vm1457, %v1458, %v1456
    %v1460 = vrsqrt.pop %v1054
    %v1461 = vmul.f32 %v1054, %v1460
    %vm1462 = vcmp.eq.f32.partialorder %v1054, inf
    %v1463 = vsel %vm1462, %v1054, %v1461
    %vm1464 = vcmp.eq.f32.partialorder %v1054, 0.0
    %v1465 = vand.u32 %v1054, 2147483648
    %v1466 = vsel %vm1464, %v1465, %v1463
    %v1467 = vrsqrt.pop %v1055
    %v1468 = vmul.f32 %v1055, %v1467
    %vm1469 = vcmp.eq.f32.partialorder %v1055, inf
    %v1470 = vsel %vm1469, %v1055, %v1468
    %vm1471 = vcmp.eq.f32.partialorder %v1055, 0.0
    %v1472 = vand.u32 %v1055, 2147483648
    %v1473 = vsel %vm1471, %v1472, %v1470
    %v1474 = vrsqrt.pop %v1056
    %v1475 = vmul.f32 %v1056, %v1474
    %vm1476 = vcmp.eq.f32.partialorder %v1056, inf
    %v1477 = vsel %vm1476, %v1056, %v1475
    %vm1478 = vcmp.eq.f32.partialorder %v1056, 0.0
    %v1479 = vand.u32 %v1056, 2147483648
    %v1480 = vsel %vm1478, %v1479, %v1477
    %v1481 = vrsqrt.pop %v1057
    %v1482 = vmul.f32 %v1057, %v1481
    %vm1483 = vcmp.eq.f32.partialorder %v1057, inf
    %v1484 = vsel %vm1483, %v1057, %v1482
    %vm1485 = vcmp.eq.f32.partialorder %v1057, 0.0
    %v1486 = vand.u32 %v1057, 2147483648
    %v1487 = vsel %vm1485, %v1486, %v1484
    %v1488 = vrsqrt.pop %v1058
    %v1489 = vmul.f32 %v1058, %v1488
    %vm1490 = vcmp.eq.f32.partialorder %v1058, inf
    %v1491 = vsel %vm1490, %v1058, %v1489
    %vm1492 = vcmp.eq.f32.partialorder %v1058, 0.0
    %v1493 = vand.u32 %v1058, 2147483648
    %v1494 = vsel %vm1492, %v1493, %v1491
    %v1495 = vrsqrt.pop %v1059
    %v1496 = vmul.f32 %v1059, %v1495
    %vm1497 = vcmp.eq.f32.partialorder %v1059, inf
    %v1498 = vsel %vm1497, %v1059, %v1496
    %vm1499 = vcmp.eq.f32.partialorder %v1059, 0.0
    %v1500 = vand.u32 %v1059, 2147483648
    %v1501 = vsel %vm1499, %v1500, %v1498
    %v1502 = vrsqrt.pop %v1060
    %v1503 = vmul.f32 %v1060, %v1502
    %vm1504 = vcmp.eq.f32.partialorder %v1060, inf
    %v1505 = vsel %vm1504, %v1060, %v1503
    %vm1506 = vcmp.eq.f32.partialorder %v1060, 0.0
    %v1507 = vand.u32 %v1060, 2147483648
    %v1508 = vsel %vm1506, %v1507, %v1505
    %v1509 = vadd.f32 %v1067, 0.05
    %v1510 = vadd.f32 %v1074, 0.05
    %v1511 = vadd.f32 %v1081, 0.05
    %v1512 = vadd.f32 %v1088, 0.05
    %v1513 = vadd.f32 %v1095, 0.05
    %v1514 = vadd.f32 %v1102, 0.05
    %v1515 = vadd.f32 %v1109, 0.05
    %v1516 = vadd.f32 %v1116, 0.05
    %v1517 = vadd.f32 %v1123, 0.05
    %v1518 = vadd.f32 %v1130, 0.05
    %v1519 = vadd.f32 %v1137, 0.05
    %v1520 = vadd.f32 %v1144, 0.05
    %v1521 = vadd.f32 %v1151, 0.05
    %v1522 = vadd.f32 %v1158, 0.05
    %v1523 = vadd.f32 %v1165, 0.05
    %v1524 = vadd.f32 %v1172, 0.05
    %v1525 = vadd.f32 %v1179, 0.05
    %v1526 = vadd.f32 %v1186, 0.05
    %v1527 = vadd.f32 %v1193, 0.05
    %v1528 = vadd.f32 %v1200, 0.05
    %v1529 = vadd.f32 %v1207, 0.05
    %v1530 = vadd.f32 %v1214, 0.05
    %v1531 = vadd.f32 %v1221, 0.05
    %v1532 = vadd.f32 %v1228, 0.05
    %v1533 = vadd.f32 %v1235, 0.05
    %v1534 = vadd.f32 %v1242, 0.05
    %v1535 = vadd.f32 %v1249, 0.05
    %v1536 = vadd.f32 %v1256, 0.05
    %v1537 = vadd.f32 %v1263, 0.05
    %v1538 = vadd.f32 %v1270, 0.05
    %v1539 = vadd.f32 %v1277, 0.05
    %v1540 = vadd.f32 %v1284, 0.05
    %v1541 = vadd.f32 %v1291, 0.05
    %v1542 = vadd.f32 %v1298, 0.05
    %v1543 = vadd.f32 %v1305, 0.05
    %v1544 = vadd.f32 %v1312, 0.05
    %v1545 = vadd.f32 %v1319, 0.05
    %v1546 = vadd.f32 %v1326, 0.05
    %v1547 = vadd.f32 %v1333, 0.05
    %v1548 = vadd.f32 %v1340, 0.05
    %v1549 = vadd.f32 %v1347, 0.05
    %v1550 = vadd.f32 %v1354, 0.05
    %v1551 = vadd.f32 %v1361, 0.05
    %v1552 = vadd.f32 %v1368, 0.05
    %v1553 = vadd.f32 %v1375, 0.05
    %v1554 = vadd.f32 %v1382, 0.05
    %v1555 = vadd.f32 %v1389, 0.05
    %v1556 = vadd.f32 %v1396, 0.05
    %v1557 = vadd.f32 %v1403, 0.05
    %v1558 = vadd.f32 %v1410, 0.05
    %v1559 = vadd.f32 %v1417, 0.05
    %v1560 = vadd.f32 %v1424, 0.05
    %v1561 = vadd.f32 %v1431, 0.05
    %v1562 = vadd.f32 %v1438, 0.05
    %v1563 = vadd.f32 %v1445, 0.05
    %v1564 = vadd.f32 %v1452, 0.05
    %v1565 = vadd.f32 %v1459, 0.05
    %v1566 = vadd.f32 %v1466, 0.05
    %v1567 = vadd.f32 %v1473, 0.05
    %v1568 = vadd.f32 %v1480, 0.05
    %v1569 = vadd.f32 %v1487, 0.05
    %v1570 = vadd.f32 %v1494, 0.05
    %v1571 = vadd.f32 %v1501, 0.05
    %v1572 = vadd.f32 %v1508, 0.05
    %v1573 = vrcp.pop %v1509
    %v1574 = vrcp.pop %v1510
    %v1575 = vrcp.pop %v1511
    %v1576 = vrcp.pop %v1512
    %v1577 = vrcp.pop %v1513
    %v1578 = vrcp.pop %v1514
    %v1579 = vrcp.pop %v1515
    %v1580 = vrcp.pop %v1516
    %v1581 = vrcp.pop %v1517
    %v1582 = vrcp.pop %v1518
    %v1583 = vrcp.pop %v1519
    %v1584 = vrcp.pop %v1520
    %v1585 = vrcp.pop %v1521
    %v1586 = vrcp.pop %v1522
    %v1587 = vrcp.pop %v1523
    %v1588 = vrcp.pop %v1524
    %v1589 = vrcp.pop %v1525
    %v1590 = vrcp.pop %v1526
    %v1591 = vrcp.pop %v1527
    %v1592 = vrcp.pop %v1528
    %v1593 = vrcp.pop %v1529
    %v1594 = vrcp.pop %v1530
    %v1595 = vrcp.pop %v1531
    %v1596 = vrcp.pop %v1532
    %v1597 = vrcp.pop %v1533
    %v1598 = vrcp.pop %v1534
    %v1599 = vrcp.pop %v1535
    %v1600 = vrcp.pop %v1536
    %v1601 = vrcp.pop %v1537
    %v1602 = vrcp.pop %v1538
    %v1603 = vrcp.pop %v1539
    %v1604 = vrcp.pop %v1540
    %v1605 = vrcp.pop %v1541
    %v1606 = vrcp.pop %v1542
    %v1607 = vrcp.pop %v1543
    %v1608 = vrcp.pop %v1544
    %v1609 = vrcp.pop %v1545
    %v1610 = vrcp.pop %v1546
    %v1611 = vrcp.pop %v1547
    %v1612 = vrcp.pop %v1548
    %v1613 = vrcp.pop %v1549
    %v1614 = vrcp.pop %v1550
    %v1615 = vrcp.pop %v1551
    %v1616 = vrcp.pop %v1552
    %v1617 = vrcp.pop %v1553
    %v1618 = vrcp.pop %v1554
    %v1619 = vrcp.pop %v1555
    %v1620 = vrcp.pop %v1556
    %v1621 = vrcp.pop %v1557
    %v1622 = vrcp.pop %v1558
    %v1623 = vrcp.pop %v1559
    %v1624 = vrcp.pop %v1560
    %v1625 = vrcp.pop %v1561
    %v1626 = vrcp.pop %v1562
    %v1627 = vrcp.pop %v1563
    %v1628 = vrcp.pop %v1564
    %v1629 = vrcp.pop %v1565
    %v1630 = vrcp.pop %v1566
    %v1631 = vrcp.pop %v1567
    %v1632 = vrcp.pop %v1568
    %v1633 = vrcp.pop %v1569
    %v1634 = vrcp.pop %v1570
    %v1635 = vrcp.pop %v1571
    %v1636 = vrcp.pop %v1572
    %v1637 = vadd.f32 %v1573, %v1574
    %v1638 = vadd.f32 %v1637, %v1575
    %v1639 = vadd.f32 %v1638, %v1576
    %v1640 = vadd.f32 %v1639, %v1577
    %v1641 = vadd.f32 %v1640, %v1578
    %v1642 = vadd.f32 %v1641, %v1579
    %v1643 = vadd.f32 %v1642, %v1580
    %v1644 = vadd.f32 %v1643, %v1581
    %v1645 = vadd.f32 %v1644, %v1582
    %v1646 = vadd.f32 %v1645, %v1583
    %v1647 = vadd.f32 %v1646, %v1584
    %v1648 = vadd.f32 %v1647, %v1585
    %v1649 = vadd.f32 %v1648, %v1586
    %v1650 = vadd.f32 %v1649, %v1587
    %v1651 = vadd.f32 %v1650, %v1588
    %v1652 = vadd.f32 %v1651, %v1589
    %v1653 = vadd.f32 %v1652, %v1590
    %v1654 = vadd.f32 %v1653, %v1591
    %v1655 = vadd.f32 %v1654, %v1592
    %v1656 = vadd.f32 %v1655, %v1593
    %v1657 = vadd.f32 %v1656, %v1594
    %v1658 = vadd.f32 %v1657, %v1595
    %v1659 = vadd.f32 %v1658, %v1596
    %v1660 = vadd.f32 %v1659, %v1597
    %v1661 = vadd.f32 %v1660, %v1598
    %v1662 = vadd.f32 %v1661, %v1599
    %v1663 = vadd.f32 %v1662, %v1600
    %v1664 = vadd.f32 %v1663, %v1601
    %v1665 = vadd.f32 %v1664, %v1602
    %v1666 = vadd.f32 %v1665, %v1603
    %v1667 = vadd.f32 %v1666, %v1604
    %v1668 = vadd.f32 %v1667, %v1605
    %v1669 = vadd.f32 %v1668, %v1606
    %v1670 = vadd.f32 %v1669, %v1607
    %v1671 = vadd.f32 %v1670, %v1608
    %v1672 = vadd.f32 %v1671, %v1609
    %v1673 = vadd.f32 %v1672, %v1610
    %v1674 = vadd.f32 %v1673, %v1611
    %v1675 = vadd.f32 %v1674, %v1612
    %v1676 = vadd.f32 %v1675, %v1613
    %v1677 = vadd.f32 %v1676, %v1614
    %v1678 = vadd.f32 %v1677, %v1615
    %v1679 = vadd.f32 %v1678, %v1616
    %v1680 = vadd.f32 %v1679, %v1617
    %v1681 = vadd.f32 %v1680, %v1618
    %v1682 = vadd.f32 %v1681, %v1619
    %v1683 = vadd.f32 %v1682, %v1620
    %v1684 = vadd.f32 %v1683, %v1621
    %v1685 = vadd.f32 %v1684, %v1622
    %v1686 = vadd.f32 %v1685, %v1623
    %v1687 = vadd.f32 %v1686, %v1624
    %v1688 = vadd.f32 %v1687, %v1625
    %v1689 = vadd.f32 %v1688, %v1626
    %v1690 = vadd.f32 %v1689, %v1627
    %v1691 = vadd.f32 %v1690, %v1628
    %v1692 = vadd.f32 %v1691, %v1629
    %v1693 = vadd.f32 %v1692, %v1630
    %v1694 = vadd.f32 %v1693, %v1631
    %v1695 = vadd.f32 %v1694, %v1632
    %v1696 = vadd.f32 %v1695, %v1633
    %v1697 = vadd.f32 %v1696, %v1634
    %v1698 = vadd.f32 %v1697, %v1635
    %v1699 = vadd.f32 %v1698, %v1636
    %1700 = vadd.xlane.f32.xlu0 %v1699
    %v1701 = vpop.xlane.xlu0 %1700
    %v1702 = vrot.slane %v1701, 4
    %v1703 = vadd.f32 %v1701, %v1702
    %v1704 = vrot.slane %v1703, 2
    %v1705 = vadd.f32 %v1703, %v1704
    %v1706 = vrot.slane %v1705, 1
    %v1707 = vadd.f32 %v1705, %v1706
    %s1708 = vtos %v1707
    %p1709 = scmp.eq.s32.totalorder 0, 0
    // Predicated region
    $region22: #{tpu_custom_call.1} parent=1 // pred_check
      %p1710 = pneg %p1709
    $region23: #{tpu_custom_call.1} parent=1 // pred_check_branch
      %1712 = sbr.rel (%p1710) target = $region25
    $region24: #{tpu_custom_call.1} parent=1 // pred_region
      %v1713 = vsub.f32 %v50, %v82
      %v1714 = vsub.f32 %v51, %v83
      %v1715 = vsub.f32 %v52, %v84
      %v1716 = vsub.f32 %v53, %v85
      %v1717 = vsub.f32 %v54, %v86
      %v1718 = vsub.f32 %v55, %v87
      %v1719 = vsub.f32 %v56, %v88
      %v1720 = vsub.f32 %v57, %v89
      %v1721 = vsub.f32 %v58, %v90
      %v1722 = vsub.f32 %v59, %v91
      %v1723 = vsub.f32 %v60, %v92
      %v1724 = vsub.f32 %v61, %v93
      %v1725 = vsub.f32 %v62, %v94
      %v1726 = vsub.f32 %v63, %v95
      %v1727 = vsub.f32 %v64, %v96
      %v1728 = vsub.f32 %v65, %v97
      %v1729 = vsub.f32 %v66, %v98
      %v1730 = vsub.f32 %v67, %v99
      %v1731 = vsub.f32 %v68, %v100
      %v1732 = vsub.f32 %v69, %v101
      %v1733 = vsub.f32 %v70, %v102
      %v1734 = vsub.f32 %v71, %v103
      %v1735 = vsub.f32 %v72, %v104
      %v1736 = vsub.f32 %v73, %v105
      %v1737 = vsub.f32 %v74, %v106
      %v1738 = vsub.f32 %v75, %v107
      %v1739 = vsub.f32 %v76, %v108
      %v1740 = vsub.f32 %v77, %v109
      %v1741 = vsub.f32 %v78, %v110
      %v1742 = vsub.f32 %v79, %v111
      %v1743 = vsub.f32 %v80, %v112
      %v1744 = vsub.f32 %v81, %v113
      %v1745 = vmul.f32 %v1713, %v1713
      %v1746 = vmul.f32 %v1714, %v1714
      %v1747 = vmul.f32 %v1715, %v1715
      %v1748 = vmul.f32 %v1716, %v1716
      %v1749 = vmul.f32 %v1717, %v1717
      %v1750 = vmul.f32 %v1718, %v1718
      %v1751 = vmul.f32 %v1719, %v1719
      %v1752 = vmul.f32 %v1720, %v1720
      %v1753 = vmul.f32 %v1721, %v1721
      %v1754 = vmul.f32 %v1722, %v1722
      %v1755 = vmul.f32 %v1723, %v1723
      %v1756 = vmul.f32 %v1724, %v1724
      %v1757 = vmul.f32 %v1725, %v1725
      %v1758 = vmul.f32 %v1726, %v1726
      %v1759 = vmul.f32 %v1727, %v1727
      %v1760 = vmul.f32 %v1728, %v1728
      %v1761 = vmul.f32 %v1729, %v1729
      %v1762 = vmul.f32 %v1730, %v1730
      %v1763 = vmul.f32 %v1731, %v1731
      %v1764 = vmul.f32 %v1732, %v1732
      %v1765 = vmul.f32 %v1733, %v1733
      %v1766 = vmul.f32 %v1734, %v1734
      %v1767 = vmul.f32 %v1735, %v1735
      %v1768 = vmul.f32 %v1736, %v1736
      %v1769 = vmul.f32 %v1737, %v1737
      %v1770 = vmul.f32 %v1738, %v1738
      %v1771 = vmul.f32 %v1739, %v1739
      %v1772 = vmul.f32 %v1740, %v1740
      %v1773 = vmul.f32 %v1741, %v1741
      %v1774 = vmul.f32 %v1742, %v1742
      %v1775 = vmul.f32 %v1743, %v1743
      %v1776 = vmul.f32 %v1744, %v1744
      %1777 = vadd.xlane.f32.xlu0 %v1745
      %v1778 = vpop.xlane.xlu0 %1777
      %1779 = vadd.xlane.f32.xlu0 %v1746
      %v1780 = vpop.xlane.xlu0 %1779
      %1781 = vadd.xlane.f32.xlu0 %v1747
      %v1782 = vpop.xlane.xlu0 %1781
      %1783 = vadd.xlane.f32.xlu0 %v1748
      %v1784 = vpop.xlane.xlu0 %1783
      %1785 = vadd.xlane.f32.xlu0 %v1749
      %v1786 = vpop.xlane.xlu0 %1785
      %1787 = vadd.xlane.f32.xlu0 %v1750
      %v1788 = vpop.xlane.xlu0 %1787
      %1789 = vadd.xlane.f32.xlu0 %v1751
      %v1790 = vpop.xlane.xlu0 %1789
      %1791 = vadd.xlane.f32.xlu0 %v1752
      %v1792 = vpop.xlane.xlu0 %1791
      %1793 = vadd.xlane.f32.xlu0 %v1753
      %v1794 = vpop.xlane.xlu0 %1793
      %1795 = vadd.xlane.f32.xlu0 %v1754
      %v1796 = vpop.xlane.xlu0 %1795
      %1797 = vadd.xlane.f32.xlu0 %v1755
      %v1798 = vpop.xlane.xlu0 %1797
      %1799 = vadd.xlane.f32.xlu0 %v1756
      %v1800 = vpop.xlane.xlu0 %1799
      %1801 = vadd.xlane.f32.xlu0 %v1757
      %v1802 = vpop.xlane.xlu0 %1801
      %1803 = vadd.xlane.f32.xlu0 %v1758
      %v1804 = vpop.xlane.xlu0 %1803
      %1805 = vadd.xlane.f32.xlu0 %v1759
      %v1806 = vpop.xlane.xlu0 %1805
      %1807 = vadd.xlane.f32.xlu0 %v1760
      %v1808 = vpop.xlane.xlu0 %1807
      %1809 = vadd.xlane.f32.xlu0 %v1761
      %v1810 = vpop.xlane.xlu0 %1809
      %1811 = vadd.xlane.f32.xlu0 %v1762
      %v1812 = vpop.xlane.xlu0 %1811
      %1813 = vadd.xlane.f32.xlu0 %v1763
      %v1814 = vpop.xlane.xlu0 %1813
      %1815 = vadd.xlane.f32.xlu0 %v1764
      %v1816 = vpop.xlane.xlu0 %1815
      %1817 = vadd.xlane.f32.xlu0 %v1765
      %v1818 = vpop.xlane.xlu0 %1817
      %1819 = vadd.xlane.f32.xlu0 %v1766
      %v1820 = vpop.xlane.xlu0 %1819
      %1821 = vadd.xlane.f32.xlu0 %v1767
      %v1822 = vpop.xlane.xlu0 %1821
      %1823 = vadd.xlane.f32.xlu0 %v1768
      %v1824 = vpop.xlane.xlu0 %1823
      %1825 = vadd.xlane.f32.xlu0 %v1769
      %v1826 = vpop.xlane.xlu0 %1825
      %1827 = vadd.xlane.f32.xlu0 %v1770
      %v1828 = vpop.xlane.xlu0 %1827
      %1829 = vadd.xlane.f32.xlu0 %v1771
      %v1830 = vpop.xlane.xlu0 %1829
      %1831 = vadd.xlane.f32.xlu0 %v1772
      %v1832 = vpop.xlane.xlu0 %1831
      %1833 = vadd.xlane.f32.xlu0 %v1773
      %v1834 = vpop.xlane.xlu0 %1833
      %1835 = vadd.xlane.f32.xlu0 %v1774
      %v1836 = vpop.xlane.xlu0 %1835
      %1837 = vadd.xlane.f32.xlu0 %v1775
      %v1838 = vpop.xlane.xlu0 %1837
      %1839 = vadd.xlane.f32.xlu0 %v1776
      %v1840 = vpop.xlane.xlu0 %1839
      %v1841 = vrsqrt.pop %v1778
      %v1842 = vmul.f32 %v1778, %v1841
      %vm1843 = vcmp.eq.f32.partialorder %v1778, inf
      %v1844 = vsel %vm1843, %v1778, %v1842
      %vm1845 = vcmp.eq.f32.partialorder %v1778, 0.0
      %v1846 = vand.u32 %v1778, 2147483648
      %v1847 = vsel %vm1845, %v1846, %v1844
      %v1848 = vrsqrt.pop %v1780
      %v1849 = vmul.f32 %v1780, %v1848
      %vm1850 = vcmp.eq.f32.partialorder %v1780, inf
      %v1851 = vsel %vm1850, %v1780, %v1849
      %vm1852 = vcmp.eq.f32.partialorder %v1780, 0.0
      %v1853 = vand.u32 %v1780, 2147483648
      %v1854 = vsel %vm1852, %v1853, %v1851
      %v1855 = vrsqrt.pop %v1782
      %v1856 = vmul.f32 %v1782, %v1855
      %vm1857 = vcmp.eq.f32.partialorder %v1782, inf
      %v1858 = vsel %vm1857, %v1782, %v1856
      %vm1859 = vcmp.eq.f32.partialorder %v1782, 0.0
      %v1860 = vand.u32 %v1782, 2147483648
      %v1861 = vsel %vm1859, %v1860, %v1858
      %v1862 = vrsqrt.pop %v1784
      %v1863 = vmul.f32 %v1784, %v1862
      %vm1864 = vcmp.eq.f32.partialorder %v1784, inf
      %v1865 = vsel %vm1864, %v1784, %v1863
      %vm1866 = vcmp.eq.f32.partialorder %v1784, 0.0
      %v1867 = vand.u32 %v1784, 2147483648
      %v1868 = vsel %vm1866, %v1867, %v1865
      %v1869 = vrsqrt.pop %v1786
      %v1870 = vmul.f32 %v1786, %v1869
      %vm1871 = vcmp.eq.f32.partialorder %v1786, inf
      %v1872 = vsel %vm1871, %v1786, %v1870
      %vm1873 = vcmp.eq.f32.partialorder %v1786, 0.0
      %v1874 = vand.u32 %v1786, 2147483648
      %v1875 = vsel %vm1873, %v1874, %v1872
      %v1876 = vrsqrt.pop %v1788
      %v1877 = vmul.f32 %v1788, %v1876
      %vm1878 = vcmp.eq.f32.partialorder %v1788, inf
      %v1879 = vsel %vm1878, %v1788, %v1877
      %vm1880 = vcmp.eq.f32.partialorder %v1788, 0.0
      %v1881 = vand.u32 %v1788, 2147483648
      %v1882 = vsel %vm1880, %v1881, %v1879
      %v1883 = vrsqrt.pop %v1790
      %v1884 = vmul.f32 %v1790, %v1883
      %vm1885 = vcmp.eq.f32.partialorder %v1790, inf
      %v1886 = vsel %vm1885, %v1790, %v1884
      %vm1887 = vcmp.eq.f32.partialorder %v1790, 0.0
      %v1888 = vand.u32 %v1790, 2147483648
      %v1889 = vsel %vm1887, %v1888, %v1886
      %v1890 = vrsqrt.pop %v1792
      %v1891 = vmul.f32 %v1792, %v1890
      %vm1892 = vcmp.eq.f32.partialorder %v1792, inf
      %v1893 = vsel %vm1892, %v1792, %v1891
      %vm1894 = vcmp.eq.f32.partialorder %v1792, 0.0
      %v1895 = vand.u32 %v1792, 2147483648
      %v1896 = vsel %vm1894, %v1895, %v1893
      %v1897 = vrsqrt.pop %v1794
      %v1898 = vmul.f32 %v1794, %v1897
      %vm1899 = vcmp.eq.f32.partialorder %v1794, inf
      %v1900 = vsel %vm1899, %v1794, %v1898
      %vm1901 = vcmp.eq.f32.partialorder %v1794, 0.0
      %v1902 = vand.u32 %v1794, 2147483648
      %v1903 = vsel %vm1901, %v1902, %v1900
      %v1904 = vrsqrt.pop %v1796
      %v1905 = vmul.f32 %v1796, %v1904
      %vm1906 = vcmp.eq.f32.partialorder %v1796, inf
      %v1907 = vsel %vm1906, %v1796, %v1905
      %vm1908 = vcmp.eq.f32.partialorder %v1796, 0.0
      %v1909 = vand.u32 %v1796, 2147483648
      %v1910 = vsel %vm1908, %v1909, %v1907
      %v1911 = vrsqrt.pop %v1798
      %v1912 = vmul.f32 %v1798, %v1911
      %vm1913 = vcmp.eq.f32.partialorder %v1798, inf
      %v1914 = vsel %vm1913, %v1798, %v1912
      %vm1915 = vcmp.eq.f32.partialorder %v1798, 0.0
      %v1916 = vand.u32 %v1798, 2147483648
      %v1917 = vsel %vm1915, %v1916, %v1914
      %v1918 = vrsqrt.pop %v1800
      %v1919 = vmul.f32 %v1800, %v1918
      %vm1920 = vcmp.eq.f32.partialorder %v1800, inf
      %v1921 = vsel %vm1920, %v1800, %v1919
      %vm1922 = vcmp.eq.f32.partialorder %v1800, 0.0
      %v1923 = vand.u32 %v1800, 2147483648
      %v1924 = vsel %vm1922, %v1923, %v1921
      %v1925 = vrsqrt.pop %v1802
      %v1926 = vmul.f32 %v1802, %v1925
      %vm1927 = vcmp.eq.f32.partialorder %v1802, inf
      %v1928 = vsel %vm1927, %v1802, %v1926
      %vm1929 = vcmp.eq.f32.partialorder %v1802, 0.0
      %v1930 = vand.u32 %v1802, 2147483648
      %v1931 = vsel %vm1929, %v1930, %v1928
      %v1932 = vrsqrt.pop %v1804
      %v1933 = vmul.f32 %v1804, %v1932
      %vm1934 = vcmp.eq.f32.partialorder %v1804, inf
      %v1935 = vsel %vm1934, %v1804, %v1933
      %vm1936 = vcmp.eq.f32.partialorder %v1804, 0.0
      %v1937 = vand.u32 %v1804, 2147483648
      %v1938 = vsel %vm1936, %v1937, %v1935
      %v1939 = vrsqrt.pop %v1806
      %v1940 = vmul.f32 %v1806, %v1939
      %vm1941 = vcmp.eq.f32.partialorder %v1806, inf
      %v1942 = vsel %vm1941, %v1806, %v1940
      %vm1943 = vcmp.eq.f32.partialorder %v1806, 0.0
      %v1944 = vand.u32 %v1806, 2147483648
      %v1945 = vsel %vm1943, %v1944, %v1942
      %v1946 = vrsqrt.pop %v1808
      %v1947 = vmul.f32 %v1808, %v1946
      %vm1948 = vcmp.eq.f32.partialorder %v1808, inf
      %v1949 = vsel %vm1948, %v1808, %v1947
      %vm1950 = vcmp.eq.f32.partialorder %v1808, 0.0
      %v1951 = vand.u32 %v1808, 2147483648
      %v1952 = vsel %vm1950, %v1951, %v1949
      %v1953 = vrsqrt.pop %v1810
      %v1954 = vmul.f32 %v1810, %v1953
      %vm1955 = vcmp.eq.f32.partialorder %v1810, inf
      %v1956 = vsel %vm1955, %v1810, %v1954
      %vm1957 = vcmp.eq.f32.partialorder %v1810, 0.0
      %v1958 = vand.u32 %v1810, 2147483648
      %v1959 = vsel %vm1957, %v1958, %v1956
      %v1960 = vrsqrt.pop %v1812
      %v1961 = vmul.f32 %v1812, %v1960
      %vm1962 = vcmp.eq.f32.partialorder %v1812, inf
      %v1963 = vsel %vm1962, %v1812, %v1961
      %vm1964 = vcmp.eq.f32.partialorder %v1812, 0.0
      %v1965 = vand.u32 %v1812, 2147483648
      %v1966 = vsel %vm1964, %v1965, %v1963
      %v1967 = vrsqrt.pop %v1814
      %v1968 = vmul.f32 %v1814, %v1967
      %vm1969 = vcmp.eq.f32.partialorder %v1814, inf
      %v1970 = vsel %vm1969, %v1814, %v1968
      %vm1971 = vcmp.eq.f32.partialorder %v1814, 0.0
      %v1972 = vand.u32 %v1814, 2147483648
      %v1973 = vsel %vm1971, %v1972, %v1970
      %v1974 = vrsqrt.pop %v1816
      %v1975 = vmul.f32 %v1816, %v1974
      %vm1976 = vcmp.eq.f32.partialorder %v1816, inf
      %v1977 = vsel %vm1976, %v1816, %v1975
      %vm1978 = vcmp.eq.f32.partialorder %v1816, 0.0
      %v1979 = vand.u32 %v1816, 2147483648
      %v1980 = vsel %vm1978, %v1979, %v1977
      %v1981 = vrsqrt.pop %v1818
      %v1982 = vmul.f32 %v1818, %v1981
      %vm1983 = vcmp.eq.f32.partialorder %v1818, inf
      %v1984 = vsel %vm1983, %v1818, %v1982
      %vm1985 = vcmp.eq.f32.partialorder %v1818, 0.0
      %v1986 = vand.u32 %v1818, 2147483648
      %v1987 = vsel %vm1985, %v1986, %v1984
      %v1988 = vrsqrt.pop %v1820
      %v1989 = vmul.f32 %v1820, %v1988
      %vm1990 = vcmp.eq.f32.partialorder %v1820, inf
      %v1991 = vsel %vm1990, %v1820, %v1989
      %vm1992 = vcmp.eq.f32.partialorder %v1820, 0.0
      %v1993 = vand.u32 %v1820, 2147483648
      %v1994 = vsel %vm1992, %v1993, %v1991
      %v1995 = vrsqrt.pop %v1822
      %v1996 = vmul.f32 %v1822, %v1995
      %vm1997 = vcmp.eq.f32.partialorder %v1822, inf
      %v1998 = vsel %vm1997, %v1822, %v1996
      %vm1999 = vcmp.eq.f32.partialorder %v1822, 0.0
      %v2000 = vand.u32 %v1822, 2147483648
      %v2001 = vsel %vm1999, %v2000, %v1998
      %v2002 = vrsqrt.pop %v1824
      %v2003 = vmul.f32 %v1824, %v2002
      %vm2004 = vcmp.eq.f32.partialorder %v1824, inf
      %v2005 = vsel %vm2004, %v1824, %v2003
      %vm2006 = vcmp.eq.f32.partialorder %v1824, 0.0
      %v2007 = vand.u32 %v1824, 2147483648
      %v2008 = vsel %vm2006, %v2007, %v2005
      %v2009 = vrsqrt.pop %v1826
      %v2010 = vmul.f32 %v1826, %v2009
      %vm2011 = vcmp.eq.f32.partialorder %v1826, inf
      %v2012 = vsel %vm2011, %v1826, %v2010
      %vm2013 = vcmp.eq.f32.partialorder %v1826, 0.0
      %v2014 = vand.u32 %v1826, 2147483648
      %v2015 = vsel %vm2013, %v2014, %v2012
      %v2016 = vrsqrt.pop %v1828
      %v2017 = vmul.f32 %v1828, %v2016
      %vm2018 = vcmp.eq.f32.partialorder %v1828, inf
      %v2019 = vsel %vm2018, %v1828, %v2017
      %vm2020 = vcmp.eq.f32.partialorder %v1828, 0.0
      %v2021 = vand.u32 %v1828, 2147483648
      %v2022 = vsel %vm2020, %v2021, %v2019
      %v2023 = vrsqrt.pop %v1830
      %v2024 = vmul.f32 %v1830, %v2023
      %vm2025 = vcmp.eq.f32.partialorder %v1830, inf
      %v2026 = vsel %vm2025, %v1830, %v2024
      %vm2027 = vcmp.eq.f32.partialorder %v1830, 0.0
      %v2028 = vand.u32 %v1830, 2147483648
      %v2029 = vsel %vm2027, %v2028, %v2026
      %v2030 = vrsqrt.pop %v1832
      %v2031 = vmul.f32 %v1832, %v2030
      %vm2032 = vcmp.eq.f32.partialorder %v1832, inf
      %v2033 = vsel %vm2032, %v1832, %v2031
      %vm2034 = vcmp.eq.f32.partialorder %v1832, 0.0
      %v2035 = vand.u32 %v1832, 2147483648
      %v2036 = vsel %vm2034, %v2035, %v2033
      %v2037 = vrsqrt.pop %v1834
      %v2038 = vmul.f32 %v1834, %v2037
      %vm2039 = vcmp.eq.f32.partialorder %v1834, inf
      %v2040 = vsel %vm2039, %v1834, %v2038
      %vm2041 = vcmp.eq.f32.partialorder %v1834, 0.0
      %v2042 = vand.u32 %v1834, 2147483648
      %v2043 = vsel %vm2041, %v2042, %v2040
      %v2044 = vrsqrt.pop %v1836
      %v2045 = vmul.f32 %v1836, %v2044
      %vm2046 = vcmp.eq.f32.partialorder %v1836, inf
      %v2047 = vsel %vm2046, %v1836, %v2045
      %vm2048 = vcmp.eq.f32.partialorder %v1836, 0.0
      %v2049 = vand.u32 %v1836, 2147483648
      %v2050 = vsel %vm2048, %v2049, %v2047
      %v2051 = vrsqrt.pop %v1838
      %v2052 = vmul.f32 %v1838, %v2051
      %vm2053 = vcmp.eq.f32.partialorder %v1838, inf
      %v2054 = vsel %vm2053, %v1838, %v2052
      %vm2055 = vcmp.eq.f32.partialorder %v1838, 0.0
      %v2056 = vand.u32 %v1838, 2147483648
      %v2057 = vsel %vm2055, %v2056, %v2054
      %v2058 = vrsqrt.pop %v1840
      %v2059 = vmul.f32 %v1840, %v2058
      %vm2060 = vcmp.eq.f32.partialorder %v1840, inf
      %v2061 = vsel %vm2060, %v1840, %v2059
      %vm2062 = vcmp.eq.f32.partialorder %v1840, 0.0
      %v2063 = vand.u32 %v1840, 2147483648
      %v2064 = vsel %vm2062, %v2063, %v2061
      %s2065 = sld [smem:[#allocation7]]
      %vm2066 = vcmask 7168
      %v2067 = vsel %vm2066, %v1847, 0.0
      %v2068 = vsel %vm2066, %v1854, 0.0
      %v2069 = vadd.f32 %v2067, %v2068
      %v2070 = vsel %vm2066, %v1861, 0.0
      %v2071 = vadd.f32 %v2069, %v2070
      %v2072 = vsel %vm2066, %v1868, 0.0
      %v2073 = vadd.f32 %v2071, %v2072
      %v2074 = vsel %vm2066, %v1875, 0.0
      %v2075 = vadd.f32 %v2073, %v2074
      %v2076 = vsel %vm2066, %v1882, 0.0
      %v2077 = vadd.f32 %v2075, %v2076
      %v2078 = vsel %vm2066, %v1889, 0.0
      %v2079 = vadd.f32 %v2077, %v2078
      %v2080 = vsel %vm2066, %v1896, 0.0
      %v2081 = vadd.f32 %v2079, %v2080
      %v2082 = vsel %vm2066, %v1903, 0.0
      %v2083 = vadd.f32 %v2081, %v2082
      %v2084 = vsel %vm2066, %v1910, 0.0
      %v2085 = vadd.f32 %v2083, %v2084
      %v2086 = vsel %vm2066, %v1917, 0.0
      %v2087 = vadd.f32 %v2085, %v2086
      %v2088 = vsel %vm2066, %v1924, 0.0
      %v2089 = vadd.f32 %v2087, %v2088
      %v2090 = vsel %vm2066, %v1931, 0.0
      %v2091 = vadd.f32 %v2089, %v2090
      %v2092 = vsel %vm2066, %v1938, 0.0
      %v2093 = vadd.f32 %v2091, %v2092
      %v2094 = vsel %vm2066, %v1945, 0.0
      %v2095 = vadd.f32 %v2093, %v2094
      %v2096 = vsel %vm2066, %v1952, 0.0
      %v2097 = vadd.f32 %v2095, %v2096
      %v2098 = vsel %vm2066, %v1959, 0.0
      %v2099 = vadd.f32 %v2097, %v2098
      %v2100 = vsel %vm2066, %v1966, 0.0
      %v2101 = vadd.f32 %v2099, %v2100
      %v2102 = vsel %vm2066, %v1973, 0.0
      %v2103 = vadd.f32 %v2101, %v2102
      %v2104 = vsel %vm2066, %v1980, 0.0
      %v2105 = vadd.f32 %v2103, %v2104
      %v2106 = vsel %vm2066, %v1987, 0.0
      %v2107 = vadd.f32 %v2105, %v2106
      %v2108 = vsel %vm2066, %v1994, 0.0
      %v2109 = vadd.f32 %v2107, %v2108
      %v2110 = vsel %vm2066, %v2001, 0.0
      %v2111 = vadd.f32 %v2109, %v2110
      %v2112 = vsel %vm2066, %v2008, 0.0
      %v2113 = vadd.f32 %v2111, %v2112
      %v2114 = vsel %vm2066, %v2015, 0.0
      %v2115 = vadd.f32 %v2113, %v2114
      %v2116 = vsel %vm2066, %v2022, 0.0
      %v2117 = vadd.f32 %v2115, %v2116
      %v2118 = vsel %vm2066, %v2029, 0.0
      %v2119 = vadd.f32 %v2117, %v2118
      %v2120 = vsel %vm2066, %v2036, 0.0
      %v2121 = vadd.f32 %v2119, %v2120
      %v2122 = vsel %vm2066, %v2043, 0.0
      %v2123 = vadd.f32 %v2121, %v2122
      %v2124 = vsel %vm2066, %v2050, 0.0
      %v2125 = vadd.f32 %v2123, %v2124
      %v2126 = vsel %vm2066, %v2057, 0.0
      %v2127 = vadd.f32 %v2125, %v2126
      %v2128 = vsel %vm2066, %v2064, 0.0
      %v2129 = vadd.f32 %v2127, %v2128
      %2130 = vadd.xlane.f32.xlu0 %v2129
      %v2131 = vpop.xlane.xlu0 %2130
      %v2132 = vrot.slane %v2131, 4
      %v2133 = vadd.f32 %v2131, %v2132
      %v2134 = vrot.slane %v2133, 2
      %v2135 = vadd.f32 %v2133, %v2134
      %v2136 = vrot.slane %v2135, 1
      %v2137 = vadd.f32 %v2135, %v2136
      %s2138 = vtos %v2137
      %s2139 = sadd.f32 %s2065, %s2138
      %s2140 = scalar_lea.smem [#allocation7], 0
      %2141 = sst [smem:[%s2140]] %s2139
      %s2142 = sld [smem:[#allocation7 + $0x1]]
      %v2143 = vadd.f32 %v1847, 0.05
      %v2144 = vadd.f32 %v1854, 0.05
      %v2145 = vadd.f32 %v1861, 0.05
      %v2146 = vadd.f32 %v1868, 0.05
      %v2147 = vadd.f32 %v1875, 0.05
      %v2148 = vadd.f32 %v1882, 0.05
      %v2149 = vadd.f32 %v1889, 0.05
      %v2150 = vadd.f32 %v1896, 0.05
      %v2151 = vadd.f32 %v1903, 0.05
      %v2152 = vadd.f32 %v1910, 0.05
      %v2153 = vadd.f32 %v1917, 0.05
      %v2154 = vadd.f32 %v1924, 0.05
      %v2155 = vadd.f32 %v1931, 0.05
      %v2156 = vadd.f32 %v1938, 0.05
      %v2157 = vadd.f32 %v1945, 0.05
      %v2158 = vadd.f32 %v1952, 0.05
      %v2159 = vadd.f32 %v1959, 0.05
      %v2160 = vadd.f32 %v1966, 0.05
      %v2161 = vadd.f32 %v1973, 0.05
      %v2162 = vadd.f32 %v1980, 0.05
      %v2163 = vadd.f32 %v1987, 0.05
      %v2164 = vadd.f32 %v1994, 0.05
      %v2165 = vadd.f32 %v2001, 0.05
      %v2166 = vadd.f32 %v2008, 0.05
      %v2167 = vadd.f32 %v2015, 0.05
      %v2168 = vadd.f32 %v2022, 0.05
      %v2169 = vadd.f32 %v2029, 0.05
      %v2170 = vadd.f32 %v2036, 0.05
      %v2171 = vadd.f32 %v2043, 0.05
      %v2172 = vadd.f32 %v2050, 0.05
      %v2173 = vadd.f32 %v2057, 0.05
      %v2174 = vadd.f32 %v2064, 0.05
      %v2175 = vrcp.pop %v2143
      %v2176 = vrcp.pop %v2144
      %v2177 = vrcp.pop %v2145
      %v2178 = vrcp.pop %v2146
      %v2179 = vrcp.pop %v2147
      %v2180 = vrcp.pop %v2148
      %v2181 = vrcp.pop %v2149
      %v2182 = vrcp.pop %v2150
      %v2183 = vrcp.pop %v2151
      %v2184 = vrcp.pop %v2152
      %v2185 = vrcp.pop %v2153
      %v2186 = vrcp.pop %v2154
      %v2187 = vrcp.pop %v2155
      %v2188 = vrcp.pop %v2156
      %v2189 = vrcp.pop %v2157
      %v2190 = vrcp.pop %v2158
      %v2191 = vrcp.pop %v2159
      %v2192 = vrcp.pop %v2160
      %v2193 = vrcp.pop %v2161
      %v2194 = vrcp.pop %v2162
      %v2195 = vrcp.pop %v2163
      %v2196 = vrcp.pop %v2164
      %v2197 = vrcp.pop %v2165
      %v2198 = vrcp.pop %v2166
      %v2199 = vrcp.pop %v2167
      %v2200 = vrcp.pop %v2168
      %v2201 = vrcp.pop %v2169
      %v2202 = vrcp.pop %v2170
      %v2203 = vrcp.pop %v2171
      %v2204 = vrcp.pop %v2172
      %v2205 = vrcp.pop %v2173
      %v2206 = vrcp.pop %v2174
      %v2207 = vsel %vm2066, %v2175, 0.0
      %v2208 = vsel %vm2066, %v2176, 0.0
      %v2209 = vadd.f32 %v2207, %v2208
      %v2210 = vsel %vm2066, %v2177, 0.0
      %v2211 = vadd.f32 %v2209, %v2210
      %v2212 = vsel %vm2066, %v2178, 0.0
      %v2213 = vadd.f32 %v2211, %v2212
      %v2214 = vsel %vm2066, %v2179, 0.0
      %v2215 = vadd.f32 %v2213, %v2214
      %v2216 = vsel %vm2066, %v2180, 0.0
      %v2217 = vadd.f32 %v2215, %v2216
      %v2218 = vsel %vm2066, %v2181, 0.0
      %v2219 = vadd.f32 %v2217, %v2218
      %v2220 = vsel %vm2066, %v2182, 0.0
      %v2221 = vadd.f32 %v2219, %v2220
      %v2222 = vsel %vm2066, %v2183, 0.0
      %v2223 = vadd.f32 %v2221, %v2222
      %v2224 = vsel %vm2066, %v2184, 0.0
      %v2225 = vadd.f32 %v2223, %v2224
      %v2226 = vsel %vm2066, %v2185, 0.0
      %v2227 = vadd.f32 %v2225, %v2226
      %v2228 = vsel %vm2066, %v2186, 0.0
      %v2229 = vadd.f32 %v2227, %v2228
      %v2230 = vsel %vm2066, %v2187, 0.0
      %v2231 = vadd.f32 %v2229, %v2230
      %v2232 = vsel %vm2066, %v2188, 0.0
      %v2233 = vadd.f32 %v2231, %v2232
      %v2234 = vsel %vm2066, %v2189, 0.0
      %v2235 = vadd.f32 %v2233, %v2234
      %v2236 = vsel %vm2066, %v2190, 0.0
      %v2237 = vadd.f32 %v2235, %v2236
      %v2238 = vsel %vm2066, %v2191, 0.0
      %v2239 = vadd.f32 %v2237, %v2238
      %v2240 = vsel %vm2066, %v2192, 0.0
      %v2241 = vadd.f32 %v2239, %v2240
      %v2242 = vsel %vm2066, %v2193, 0.0
      %v2243 = vadd.f32 %v2241, %v2242
      %v2244 = vsel %vm2066, %v2194, 0.0
      %v2245 = vadd.f32 %v2243, %v2244
      %v2246 = vsel %vm2066, %v2195, 0.0
      %v2247 = vadd.f32 %v2245, %v2246
      %v2248 = vsel %vm2066, %v2196, 0.0
      %v2249 = vadd.f32 %v2247, %v2248
      %v2250 = vsel %vm2066, %v2197, 0.0
      %v2251 = vadd.f32 %v2249, %v2250
      %v2252 = vsel %vm2066, %v2198, 0.0
      %v2253 = vadd.f32 %v2251, %v2252
      %v2254 = vsel %vm2066, %v2199, 0.0
      %v2255 = vadd.f32 %v2253, %v2254
      %v2256 = vsel %vm2066, %v2200, 0.0
      %v2257 = vadd.f32 %v2255, %v2256
      %v2258 = vsel %vm2066, %v2201, 0.0
      %v2259 = vadd.f32 %v2257, %v2258
      %v2260 = vsel %vm2066, %v2202, 0.0
      %v2261 = vadd.f32 %v2259, %v2260
      %v2262 = vsel %vm2066, %v2203, 0.0
      %v2263 = vadd.f32 %v2261, %v2262
      %v2264 = vsel %vm2066, %v2204, 0.0
      %v2265 = vadd.f32 %v2263, %v2264
      %v2266 = vsel %vm2066, %v2205, 0.0
      %v2267 = vadd.f32 %v2265, %v2266
      %v2268 = vsel %vm2066, %v2206, 0.0
      %v2269 = vadd.f32 %v2267, %v2268
      %2270 = vadd.xlane.f32.xlu0 %v2269
      %v2271 = vpop.xlane.xlu0 %2270
      %v2272 = vrot.slane %v2271, 4
      %v2273 = vadd.f32 %v2271, %v2272
      %v2274 = vrot.slane %v2273, 2
      %v2275 = vadd.f32 %v2273, %v2274
      %v2276 = vrot.slane %v2275, 1
      %v2277 = vadd.f32 %v2275, %v2276
      %s2278 = vtos %v2277
      %s2279 = ssub.f32 %s1708, %s2278
      %s2280 = sadd.f32 %s2142, %s2279
      %s2281 = scalar_lea.smem [#allocation7], 1
      %2282 = sst [smem:[%s2281]] %s2280
    $region25: #{tpu_custom_call.1} parent=1 // pred_fallthru
      _
    %p2283 = scmp.ne.s32.totalorder 0, 0
    // Predicated region
    $region26: #{tpu_custom_call.1} parent=1 // pred_check
      %p2284 = pneg %p2283
    $region27: #{tpu_custom_call.1} parent=1 // pred_check_branch
      %2286 = sbr.rel (%p2284) target = $region29
    $region28: #{tpu_custom_call.1} parent=1 // pred_region
      %s2287 = sld [smem:[#allocation7 + $0x1]]
      %s2288 = sadd.f32 %s2287, %s1708
      %s2289 = scalar_lea.smem [#allocation7], 1
      %2290 = sst [smem:[%s2289]] %s2288
    $region29: #{tpu_custom_call.1} parent=1 // pred_fallthru
      _
    // Predicated region
    $region30: #{tpu_custom_call.1} parent=1 // pred_check
      _
    $region31: #{tpu_custom_call.1} parent=1 // pred_check_branch
      %2292 = sbr.rel (0) target = $region33
    $region32: #{tpu_custom_call.1} parent=1 // pred_region
      %s2294 = ssub.s32 16, 16
      %2295 = vsyncadd [#allocation4], %s2294
      %2298 = dma.smem_to_hbm [#allocation7], 16, %s2, [#allocation4]
    $region33: #{tpu_custom_call.1} parent=1 // pred_fallthru
      _
    // Predicated region
    $region34: #{tpu_custom_call.1} parent=1 // pred_check
      _
    $region35: #{tpu_custom_call.1} parent=1 // pred_check_branch
      %2300 = sbr.rel (0) target = $region37
    $region36: #{tpu_custom_call.1} parent=1 // pred_region
      %2301 = dma.done [#allocation4], 16
    $region37: #{tpu_custom_call.1} parent=1 // pred_fallthru
      _
    %2302 = sfence
    %2303 = vsyncpa [#allocation3], 1
    %2304 = vsyncpa [#allocation6], 1
    %2305 = vsyncpa [#allocation4], 1

</llo_original>
